<compile_context>
chip_gen: v6e
topology: v6e:2x2x1
jax: 0.10.0
libtpu: 0.0.40
codegen_flags: <defaults>
</compile_context>

<pallas_src>
import functools

import jax
import jax.numpy as jnp
from jax import lax
from jax.experimental import pallas as pl
from jax.experimental.pallas import tpu as pltpu


def uni_rnn_kernel(x_ref, wih_ref, whh_ref, bias_ref, o_ref, h_ref, p_ref,
                   *, seq_len, needs_mask):
    # x_ref:    (tt, bc, Ip) bf16   -- streamed input tile (time-major)
    # wih_ref:  (Ip, Hp) bf16       -- W_ih^T (zero-padded), resident
    # whh_ref:  (Hp, Hp) bf16       -- W_hh^T (zero-padded), resident
    # bias_ref: (1, Hp)  f32        -- b_ih + b_hh (zero-padded), resident
    # o_ref:    (bc, Hp) f32        -- final hidden state for this batch tile
    # h_ref:    (bc, Hp) f32        -- hidden-state carry across time tiles
    # p_ref:    (tt, bc, Hp) f32    -- per-tile input projection scratch
    t_idx = pl.program_id(1)
    tt, bc, hp = p_ref.shape
    ip = x_ref.shape[-1]

    @pl.when(t_idx == 0)
    def _init():
        h_ref[...] = jnp.zeros_like(h_ref)

    # Prologue: the whole tile's input projection as ONE batched MXU matmul.
    x_flat = x_ref[...].reshape(tt * bc, ip)
    proj = jnp.dot(x_flat, wih_ref[...], preferred_element_type=jnp.float32)
    p_ref[...] = (proj + bias_ref[...]).reshape(tt, bc, hp)

    whh = whh_ref[...]
    t_base = t_idx * tt

    def step(t, h):
        pre = p_ref[t] + jnp.dot(h.astype(whh.dtype), whh,
                                 preferred_element_type=jnp.float32)
        h_new = jnp.tanh(pre)
        if needs_mask:
            # Padded time steps (t_base + t >= seq_len) must NOT update h:
            # a zero-padded x row gives P = bias, which is not an identity step.
            h_new = jnp.where(t_base + t < seq_len, h_new, h)
        return h_new

    h = lax.fori_loop(0, tt, step, h_ref[...], unroll=min(tt, 8))
    h_ref[...] = h

    @pl.when(t_idx == pl.num_programs(1) - 1)
    def _final():
        o_ref[...] = h.astype(o_ref.dtype)


def _round_up(n, m):
    return ((n + m - 1) // m) * m


def _device_kind():
    try:
        return jax.devices()[0].device_kind.lower()
    except Exception:
        return ""


def _vmem_limit_bytes(kind):
    # v7x has 64 MiB VMEM per TensorCore; v4/v5e/v6e have 128 MiB.
    limit = (48 if "v7" in kind else 64) * 1024 * 1024
    try:
        cap = pltpu.get_tpu_info().vmem_capacity_bytes
        limit = min(limit, int(cap * 0.75))
    except Exception:
        pass
    return limit


def uni_rnn_forward(x_btc, w_ih, w_hh, b_ih, b_hh, w_fc, b_fc):
    """x_btc: (B, T, I) float32. Weights in PyTorch convention:
       w_ih (H, I), w_hh (H, H), b_ih (H,), b_hh (H,), w_fc (O, H), b_fc (O,)."""
    B, T, I = x_btc.shape
    H = w_hh.shape[0]
    f32, bf16 = jnp.float32, jnp.bfloat16

    Hp = _round_up(H, 128)      # lane padding
    Ip = _round_up(I, 128)      # lane padding
    Bp = _round_up(B, 8)        # sublane padding

    kind = _device_kind()
    is_v7 = "v7" in kind
    vmem_limit = _vmem_limit_bytes(kind)

    # Split the batch grid axis only when the chip has two TensorCores (v7x);
    # on single-TC v5e/v6e the split just doubles grid-step overhead.
    bc = Bp // 2 if (is_v7 and Bp % 16 == 0) else Bp
    n_b = Bp // bc

    # Time tile derived from the VMEM budget (conservative: assume the resident
    # weights end up double-buffered in case Buffered(1) is not honored).
    fixed_bytes = 2 * (Ip * Hp * 2 + Hp * Hp * 2 + 8 * Hp * 4)   # residents
    fixed_bytes += 2 * bc * Hp * 4 + bc * Hp * 4                  # out block + h carry
    per_step_bytes = bc * (2 * Ip * 2 + Hp * 4)                   # X (2 bufs bf16) + P scratch f32
    budget = vmem_limit - fixed_bytes - (2 << 20)                 # 2 MiB headroom
    tt = int(max(1, min(T, 256, max(budget, 0) // per_step_bytes)))
    n_t = (T + tt - 1) // tt
    Tp = n_t * tt

    # --- Operand prep (XLA): time-major, zero-padded, bf16 for MXU operands.
    x_tbi = jnp.transpose(x_btc.astype(bf16), (1, 0, 2))                     # (T, B, I)
    x_p = jnp.pad(x_tbi, ((0, Tp - T), (0, Bp - B), (0, Ip - I)))            # (Tp, Bp, Ip)
    wih_p = jnp.pad(w_ih.T, ((0, Ip - I), (0, Hp - H))).astype(bf16)         # (Ip, Hp)
    whh_p = jnp.pad(w_hh.T, ((0, Hp - H), (0, Hp - H))).astype(bf16)         # (Hp, Hp)
    bias_p = jnp.pad(b_ih + b_hh, (0, Hp - H)).reshape(1, Hp).astype(f32)    # (1, Hp)
    # Padded weight columns / bias lanes are zero => padded hidden lanes stay 0.

    cost = pl.CostEstimate(
        flops=2 * Tp * Bp * Ip * Hp + 2 * Tp * Bp * Hp * Hp,
        transcendentals=Tp * Bp * Hp,
        bytes_accessed=(Tp * Bp * Ip * 2 + Ip * Hp * 2 + Hp * Hp * 2
                        + Hp * 4 + Bp * Hp * 4),
    )

    kernel = functools.partial(uni_rnn_kernel, seq_len=T, needs_mask=(Tp != T))

    def _build_call(single_buffer_weights):
        resident = dict(pipeline_mode=pl.Buffered(1)) if single_buffer_weights else {}
        return pl.pallas_call(
            kernel,
            out_shape=jax.ShapeDtypeStruct((Bp, Hp), f32),
            grid=(n_b, n_t),
            in_specs=[
                pl.BlockSpec((tt, bc, Ip), lambda b, t: (t, b, 0)),              # streamed X
                pl.BlockSpec((Ip, Hp), lambda b, t: (0, 0), **resident),         # W_ih^T
                pl.BlockSpec((Hp, Hp), lambda b, t: (0, 0), **resident),         # W_hh^T
                pl.BlockSpec((1, Hp), lambda b, t: (0, 0), **resident),          # bias
            ],
            out_specs=pl.BlockSpec((bc, Hp), lambda b, t: (b, 0)),
            scratch_shapes=[
                pltpu.VMEM((bc, Hp), f32),        # hidden-state carry
                pltpu.VMEM((tt, bc, Hp), f32),    # per-tile input projection
            ],
            compiler_params=pltpu.CompilerParams(
                dimension_semantics=("parallel", "arbitrary"),
                vmem_limit_bytes=vmem_limit,
            ),
            cost_estimate=cost,
        )

    try:
        h_pad = _build_call(True)(x_p, wih_p, whh_p, bias_p)
    except Exception:
        # Fallback if single-buffering loop-invariant operands is unsupported.
        h_pad = _build_call(False)(x_p, wih_p, whh_p, bias_p)

    # Final FC on the last hidden state, done once by XLA (weight used once;
    # keeping it resident in VMEM for the whole grid was wasted capacity).
    h_final = h_pad[:B, :H]
    out = h_final @ w_fc.T.astype(f32) + b_fc.astype(f32)
    return out.astype(x_btc.dtype)


def uni_rnn_reference(x_btc, w_ih, w_hh, b_ih, b_hh, w_fc, b_fc):
    B, T, _ = x_btc.shape
    H = w_hh.shape[0]
    h = jnp.zeros((B, H), jnp.float32)
    for t in range(T):
        h = jnp.tanh(x_btc[:, t, :] @ w_ih.T + b_ih + h @ w_hh.T + b_hh)
    return h @ w_fc.T + b_fc


if __name__ == "__main__":
    # Small shapes consistent with the module's forward.
    B, T, input_size, hidden_size, output_size = 2, 8, 16, 32, 8

    key = jax.random.PRNGKey(0)
    keys = jax.random.split(key, 7)
    bound = 1.0 / jnp.sqrt(hidden_size)

    x = jax.random.normal(keys[0], (B, T, input_size), jnp.float32)
    w_ih = jax.random.uniform(keys[1], (hidden_size, input_size), jnp.float32, -bound, bound)
    w_hh = jax.random.uniform(keys[2], (hidden_size, hidden_size), jnp.float32, -bound, bound)
    b_ih = jax.random.uniform(keys[3], (hidden_size,), jnp.float32, -bound, bound)
    b_hh = jax.random.uniform(keys[4], (hidden_size,), jnp.float32, -bound, bound)
    w_fc = jax.random.uniform(keys[5], (output_size, hidden_size), jnp.float32, -bound, bound)
    b_fc = jax.random.uniform(keys[6], (output_size,), jnp.float32, -bound, bound)

    out = uni_rnn_forward(x, w_ih, w_hh, b_ih, b_hh, w_fc, b_fc)
    out = jax.block_until_ready(out)

    ref = uni_rnn_reference(x, w_ih, w_hh, b_ih, b_hh, w_fc, b_fc)
    assert out.shape == (B, output_size)
    # MXU operands are bf16 (f32 accumulation), so tolerance is loosened vs pure f32.
    assert jnp.allclose(out, ref, atol=5e-2, rtol=5e-2), (
        f"max abs diff = {jnp.max(jnp.abs(out - ref))}")

    print("KERNEL_OK")
</pallas_src>

<mosaic_0001>
module attributes {stable_mosaic.version = 11 : i64} {
  func.func @uni_rnn_kernel(%arg0: i32, %arg1: i32, %arg2: memref<8x8x128xbf16, #tpu.memory_space<vmem>>, %arg3: memref<128x128xbf16, #tpu.memory_space<vmem>>, %arg4: memref<128x128xbf16, #tpu.memory_space<vmem>>, %arg5: memref<1x128xf32, #tpu.memory_space<vmem>>, %arg6: memref<8x128xf32, #tpu.memory_space<vmem>>, %arg7: memref<8x128xf32, #tpu.memory_space<vmem>>, %arg8: memref<8x8x128xf32, #tpu.memory_space<vmem>>) attributes {dimension_semantics = [#tpu.dimension_semantics<parallel>, #tpu.dimension_semantics<arbitrary>], iteration_bounds = array<i64: 1, 1>, scalar_prefetch = 0 : i64, scratch_operands = 2 : i64, tpu.core_type = #tpu.core_type<tc>, window_params = [{transform_indices = @transform_0, window_bounds = array<i64: 8, 8, 128>}, {pipeline_mode = #tpu.pipeline_mode<synchronous>, transform_indices = @transform_1, window_bounds = array<i64: 128, 128>}, {pipeline_mode = #tpu.pipeline_mode<synchronous>, transform_indices = @transform_2, window_bounds = array<i64: 128, 128>}, {pipeline_mode = #tpu.pipeline_mode<synchronous>, transform_indices = @transform_3, window_bounds = array<i64: 1, 128>}, {transform_indices = @transform_4, window_bounds = array<i64: 8, 128>}]} {
    %c0_i32 = arith.constant 0 : i32
    %0 = arith.cmpi eq, %arg1, %c0_i32 : i32
    %1 = arith.extui %0 : i1 to i32
    %c0_i32_0 = arith.constant 0 : i32
    %2 = arith.cmpi ne, %1, %c0_i32_0 : i32
    scf.if %2 {
      %cst_43 = arith.constant 0.000000e+00 : f32
      %74 = vector.broadcast %cst_43 : f32 to vector<8x128xf32>
      %c0_44 = arith.constant 0 : index
      %c0_45 = arith.constant 0 : index
      %75 = vector.load %arg7[%c0_44, %c0_45] : memref<8x128xf32, #tpu.memory_space<vmem>>, vector<8x128xf32>
      tpu.vector_store %arg7[%c0_44, %c0_45], %74 {strides = array<i32>} : memref<8x128xf32, #tpu.memory_space<vmem>>, vector<8x128xf32>,
    } else {
    }
    %c0 = arith.constant 0 : index
    %c0_1 = arith.constant 0 : index
    %c0_2 = arith.constant 0 : index
    %3 = vector.load %arg2[%c0, %c0_1, %c0_2] : memref<8x8x128xbf16, #tpu.memory_space<vmem>>, vector<8x8x128xbf16>
    %4 = vector.shape_cast %3 : vector<8x8x128xbf16> to vector<64x128xbf16>
    %c0_3 = arith.constant 0 : index
    %c0_4 = arith.constant 0 : index
    %5 = vector.load %arg3[%c0_3, %c0_4] : memref<128x128xbf16, #tpu.memory_space<vmem>>, vector<128x128xbf16>
    %cst = arith.constant dense<0.000000e+00> : vector<64x128xf32>
    %6 = tpu.matmul %4, %5, %cst {dimension_numbers = #tpu.dot_dimension_numbers<[1], [0], [0], [1], [0, 0, 1, 1], [], []>} : vector<64x128xbf16>, vector<128x128xbf16>, vector<64x128xf32> -> vector<64x128xf32>
    %c0_5 = arith.constant 0 : index
    %c0_6 = arith.constant 0 : index
    %7 = vector.load %arg5[%c0_5, %c0_6] : memref<1x128xf32, #tpu.memory_space<vmem>>, vector<1x128xf32>
    %8 = vector.broadcast %7 : vector<1x128xf32> to vector<64x128xf32>
    %9 = arith.addf %6, %8 : vector<64x128xf32>
    %10 = vector.shape_cast %9 : vector<64x128xf32> to vector<8x8x128xf32>
    %c0_7 = arith.constant 0 : index
    %c0_8 = arith.constant 0 : index
    %c0_9 = arith.constant 0 : index
    %11 = vector.load %arg8[%c0_7, %c0_8, %c0_9] : memref<8x8x128xf32, #tpu.memory_space<vmem>>, vector<8x8x128xf32>
    tpu.vector_store %arg8[%c0_7, %c0_8, %c0_9], %10 {strides = array<i32>} : memref<8x8x128xf32, #tpu.memory_space<vmem>>, vector<8x8x128xf32>,
    %c0_10 = arith.constant 0 : index
    %c0_11 = arith.constant 0 : index
    %12 = vector.load %arg4[%c0_10, %c0_11] : memref<128x128xbf16, #tpu.memory_space<vmem>>, vector<128x128xbf16>
    %c0_12 = arith.constant 0 : index
    %c0_13 = arith.constant 0 : index
    %13 = vector.load %arg7[%c0_12, %c0_13] : memref<8x128xf32, #tpu.memory_space<vmem>>, vector<8x128xf32>
    %c0_i32_14 = arith.constant 0 : i32
    %14 = arith.index_cast %c0_i32_14 : i32 to index
    %c0_15 = arith.constant 0 : index
    %c0_16 = arith.constant 0 : index
    %15 = vector.load %arg8[%14, %c0_15, %c0_16] : memref<8x8x128xf32, #tpu.memory_space<vmem>>, vector<1x8x128xf32>
    %16 = vector.shape_cast %15 : vector<1x8x128xf32> to vector<8x128xf32>
    %17 = arith.truncf %13 : vector<8x128xf32> to vector<8x128xbf16>
    %cst_17 = arith.constant dense<0.000000e+00> : vector<8x128xf32>
    %18 = tpu.matmul %17, %12, %cst_17 {dimension_numbers = #tpu.dot_dimension_numbers<[1], [0], [0], [1], [0, 0, 1, 1], [], []>} : vector<8x128xbf16>, vector<128x128xbf16>, vector<8x128xf32> -> vector<8x128xf32>
    %19 = arith.addf %16, %18 : vector<8x128xf32>
    %20 = math.tanh %19 : vector<8x128xf32>
    %c1_i32 = arith.constant 1 : i32
    %21 = arith.index_cast %c1_i32 : i32 to index
    %c0_18 = arith.constant 0 : index
    %c0_19 = arith.constant 0 : index
    %22 = vector.load %arg8[%21, %c0_18, %c0_19] : memref<8x8x128xf32, #tpu.memory_space<vmem>>, vector<1x8x128xf32>
    %23 = vector.shape_cast %22 : vector<1x8x128xf32> to vector<8x128xf32>
    %24 = arith.truncf %20 : vector<8x128xf32> to vector<8x128xbf16>
    %cst_20 = arith.constant dense<0.000000e+00> : vector<8x128xf32>
    %25 = tpu.matmul %24, %12, %cst_20 {dimension_numbers = #tpu.dot_dimension_numbers<[1], [0], [0], [1], [0, 0, 1, 1], [], []>} : vector<8x128xbf16>, vector<128x128xbf16>, vector<8x128xf32> -> vector<8x128xf32>
    %26 = arith.addf %23, %25 : vector<8x128xf32>
    %27 = math.tanh %26 : vector<8x128xf32>
    %c2_i32 = arith.constant 2 : i32
    %28 = arith.index_cast %c2_i32 : i32 to index
    %c0_21 = arith.constant 0 : index
    %c0_22 = arith.constant 0 : index
    %29 = vector.load %arg8[%28, %c0_21, %c0_22] : memref<8x8x128xf32, #tpu.memory_space<vmem>>, vector<1x8x128xf32>
    %30 = vector.shape_cast %29 : vector<1x8x128xf32> to vector<8x128xf32>
    %31 = arith.truncf %27 : vector<8x128xf32> to vector<8x128xbf16>
    %cst_23 = arith.constant dense<0.000000e+00> : vector<8x128xf32>
    %32 = tpu.matmul %31, %12, %cst_23 {dimension_numbers = #tpu.dot_dimension_numbers<[1], [0], [0], [1], [0, 0, 1, 1], [], []>} : vector<8x128xbf16>, vector<128x128xbf16>, vector<8x128xf32> -> vector<8x128xf32>
    %33 = arith.addf %30, %32 : vector<8x128xf32>
    %34 = math.tanh %33 : vector<8x128xf32>
    %c3_i32 = arith.constant 3 : i32
    %35 = arith.index_cast %c3_i32 : i32 to index
    %c0_24 = arith.constant 0 : index
    %c0_25 = arith.constant 0 : index
    %36 = vector.load %arg8[%35, %c0_24, %c0_25] : memref<8x8x128xf32, #tpu.memory_space<vmem>>, vector<1x8x128xf32>
    %37 = vector.shape_cast %36 : vector<1x8x128xf32> to vector<8x128xf32>
    %38 = arith.truncf %34 : vector<8x128xf32> to vector<8x128xbf16>
    %cst_26 = arith.constant dense<0.000000e+00> : vector<8x128xf32>
    %39 = tpu.matmul %38, %12, %cst_26 {dimension_numbers = #tpu.dot_dimension_numbers<[1], [0], [0], [1], [0, 0, 1, 1], [], []>} : vector<8x128xbf16>, vector<128x128xbf16>, vector<8x128xf32> -> vector<8x128xf32>
    %40 = arith.addf %37, %39 : vector<8x128xf32>
    %41 = math.tanh %40 : vector<8x128xf32>
    %c4_i32 = arith.constant 4 : i32
    %42 = arith.index_cast %c4_i32 : i32 to index
    %c0_27 = arith.constant 0 : index
    %c0_28 = arith.constant 0 : index
    %43 = vector.load %arg8[%42, %c0_27, %c0_28] : memref<8x8x128xf32, #tpu.memory_space<vmem>>, vector<1x8x128xf32>
    %44 = vector.shape_cast %43 : vector<1x8x128xf32> to vector<8x128xf32>
    %45 = arith.truncf %41 : vector<8x128xf32> to vector<8x128xbf16>
    %cst_29 = arith.constant dense<0.000000e+00> : vector<8x128xf32>
    %46 = tpu.matmul %45, %12, %cst_29 {dimension_numbers = #tpu.dot_dimension_numbers<[1], [0], [0], [1], [0, 0, 1, 1], [], []>} : vector<8x128xbf16>, vector<128x128xbf16>, vector<8x128xf32> -> vector<8x128xf32>
    %47 = arith.addf %44, %46 : vector<8x128xf32>
    %48 = math.tanh %47 : vector<8x128xf32>
    %c5_i32 = arith.constant 5 : i32
    %49 = arith.index_cast %c5_i32 : i32 to index
    %c0_30 = arith.constant 0 : index
    %c0_31 = arith.constant 0 : index
    %50 = vector.load %arg8[%49, %c0_30, %c0_31] : memref<8x8x128xf32, #tpu.memory_space<vmem>>, vector<1x8x128xf32>
    %51 = vector.shape_cast %50 : vector<1x8x128xf32> to vector<8x128xf32>
    %52 = arith.truncf %48 : vector<8x128xf32> to vector<8x128xbf16>
    %cst_32 = arith.constant dense<0.000000e+00> : vector<8x128xf32>
    %53 = tpu.matmul %52, %12, %cst_32 {dimension_numbers = #tpu.dot_dimension_numbers<[1], [0], [0], [1], [0, 0, 1, 1], [], []>} : vector<8x128xbf16>, vector<128x128xbf16>, vector<8x128xf32> -> vector<8x128xf32>
    %54 = arith.addf %51, %53 : vector<8x128xf32>
    %55 = math.tanh %54 : vector<8x128xf32>
    %c6_i32 = arith.constant 6 : i32
    %56 = arith.index_cast %c6_i32 : i32 to index
    %c0_33 = arith.constant 0 : index
    %c0_34 = arith.constant 0 : index
    %57 = vector.load %arg8[%56, %c0_33, %c0_34] : memref<8x8x128xf32, #tpu.memory_space<vmem>>, vector<1x8x128xf32>
    %58 = vector.shape_cast %57 : vector<1x8x128xf32> to vector<8x128xf32>
    %59 = arith.truncf %55 : vector<8x128xf32> to vector<8x128xbf16>
    %cst_35 = arith.constant dense<0.000000e+00> : vector<8x128xf32>
    %60 = tpu.matmul %59, %12, %cst_35 {dimension_numbers = #tpu.dot_dimension_numbers<[1], [0], [0], [1], [0, 0, 1, 1], [], []>} : vector<8x128xbf16>, vector<128x128xbf16>, vector<8x128xf32> -> vector<8x128xf32>
    %61 = arith.addf %58, %60 : vector<8x128xf32>
    %62 = math.tanh %61 : vector<8x128xf32>
    %c7_i32 = arith.constant 7 : i32
    %63 = arith.index_cast %c7_i32 : i32 to index
    %c0_36 = arith.constant 0 : index
    %c0_37 = arith.constant 0 : index
    %64 = vector.load %arg8[%63, %c0_36, %c0_37] : memref<8x8x128xf32, #tpu.memory_space<vmem>>, vector<1x8x128xf32>
    %65 = vector.shape_cast %64 : vector<1x8x128xf32> to vector<8x128xf32>
    %66 = arith.truncf %62 : vector<8x128xf32> to vector<8x128xbf16>
    %cst_38 = arith.constant dense<0.000000e+00> : vector<8x128xf32>
    %67 = tpu.matmul %66, %12, %cst_38 {dimension_numbers = #tpu.dot_dimension_numbers<[1], [0], [0], [1], [0, 0, 1, 1], [], []>} : vector<8x128xbf16>, vector<128x128xbf16>, vector<8x128xf32> -> vector<8x128xf32>
    %68 = arith.addf %65, %67 : vector<8x128xf32>
    %69 = math.tanh %68 : vector<8x128xf32>
    %c8_i32 = arith.constant 8 : i32
    %c0_39 = arith.constant 0 : index
    %c0_40 = arith.constant 0 : index
    %70 = vector.load %arg7[%c0_39, %c0_40] : memref<8x128xf32, #tpu.memory_space<vmem>>, vector<8x128xf32>
    tpu.vector_store %arg7[%c0_39, %c0_40], %69 {strides = array<i32>} : memref<8x128xf32, #tpu.memory_space<vmem>>, vector<8x128xf32>,
    %c0_i32_41 = arith.constant 0 : i32
    %71 = arith.cmpi eq, %arg1, %c0_i32_41 : i32
    %72 = arith.extui %71 : i1 to i32
    %c0_i32_42 = arith.constant 0 : i32
    %73 = arith.cmpi ne, %72, %c0_i32_42 : i32
    scf.if %73 {
      %c0_43 = arith.constant 0 : index
      %c0_44 = arith.constant 0 : index
      %74 = vector.load %arg6[%c0_43, %c0_44] : memref<8x128xf32, #tpu.memory_space<vmem>>, vector<8x128xf32>
      tpu.vector_store %arg6[%c0_43, %c0_44], %69 {strides = array<i32>} : memref<8x128xf32, #tpu.memory_space<vmem>>, vector<8x128xf32>,
    } else {
    }
    return
  }
  func.func @transform_0(%arg0: i32, %arg1: i32) -> (i32, i32, i32) {
    %c0_i32 = arith.constant 0 : i32
    %c0_i32_0 = arith.constant 0 : i32
    return %arg1, %arg0, %c0_i32 : i32, i32, i32
  }
  func.func @transform_1(%arg0: i32, %arg1: i32) -> (i32, i32) {
    %c0_i32 = arith.constant 0 : i32
    %c0_i32_0 = arith.constant 0 : i32
    %c0_i32_1 = arith.constant 0 : i32
    return %c0_i32, %c0_i32_0 : i32, i32
  }
  func.func @transform_2(%arg0: i32, %arg1: i32) -> (i32, i32) {
    %c0_i32 = arith.constant 0 : i32
    %c0_i32_0 = arith.constant 0 : i32
    %c0_i32_1 = arith.constant 0 : i32
    return %c0_i32, %c0_i32_0 : i32, i32
  }
  func.func @transform_3(%arg0: i32, %arg1: i32) -> (i32, i32) {
    %c0_i32 = arith.constant 0 : i32
    %c0_i32_0 = arith.constant 0 : i32
    %c0_i32_1 = arith.constant 0 : i32
    return %c0_i32, %c0_i32_0 : i32, i32
  }
  func.func @transform_4(%arg0: i32, %arg1: i32) -> (i32, i32) {
    %c0_i32 = arith.constant 0 : i32
    %c0_i32_0 = arith.constant 0 : i32
    return %arg0, %c0_i32 : i32, i32
  }
}

module attributes {stable_mosaic.version = 11 : i64} {
  func.func @uni_rnn_kernel(%arg0: i32, %arg1: i32, %arg2: memref<8x8x128xbf16, #tpu.memory_space<vmem>>, %arg3: memref<128x128xbf16, #tpu.memory_space<vmem>>, %arg4: memref<128x128xbf16, #tpu.memory_space<vmem>>, %arg5: memref<1x128xf32, #tpu.memory_space<vmem>>, %arg6: memref<8x128xf32, #tpu.memory_space<vmem>>, %arg7: memref<8x128xf32, #tpu.memory_space<vmem>>, %arg8: memref<8x8x128xf32, #tpu.memory_space<vmem>>) attributes {dimension_semantics = [#tpu.dimension_semantics<parallel>, #tpu.dimension_semantics<arbitrary>], iteration_bounds = array<i64: 1, 1>, scalar_prefetch = 0 : i64, scratch_operands = 2 : i64, tpu.core_type = #tpu.core_type<tc>, window_params = [{transform_indices = @transform_0, window_bounds = array<i64: 8, 8, 128>}, {pipeline_mode = #tpu.pipeline_mode<synchronous>, transform_indices = @transform_1, window_bounds = array<i64: 128, 128>}, {pipeline_mode = #tpu.pipeline_mode<synchronous>, transform_indices = @transform_2, window_bounds = array<i64: 128, 128>}, {pipeline_mode = #tpu.pipeline_mode<synchronous>, transform_indices = @transform_3, window_bounds = array<i64: 1, 128>}, {transform_indices = @transform_4, window_bounds = array<i64: 8, 128>}]} {
    %c0_i32 = arith.constant 0 : i32
    %0 = arith.cmpi eq, %arg1, %c0_i32 : i32
    %1 = arith.extui %0 : i1 to i32
    %c0_i32_0 = arith.constant 0 : i32
    %2 = arith.cmpi ne, %1, %c0_i32_0 : i32
    scf.if %2 {
      %cst_43 = arith.constant 0.000000e+00 : f32
      %74 = vector.broadcast %cst_43 : f32 to vector<8x128xf32>
      %c0_44 = arith.constant 0 : index
      %c0_45 = arith.constant 0 : index
      %75 = vector.load %arg7[%c0_44, %c0_45] : memref<8x128xf32, #tpu.memory_space<vmem>>, vector<8x128xf32>
      tpu.vector_store %arg7[%c0_44, %c0_45], %74 {strides = array<i32>} : memref<8x128xf32, #tpu.memory_space<vmem>>, vector<8x128xf32>,
    } else {
    }
    %c0 = arith.constant 0 : index
    %c0_1 = arith.constant 0 : index
    %c0_2 = arith.constant 0 : index
    %3 = vector.load %arg2[%c0, %c0_1, %c0_2] : memref<8x8x128xbf16, #tpu.memory_space<vmem>>, vector<8x8x128xbf16>
    %4 = vector.shape_cast %3 : vector<8x8x128xbf16> to vector<64x128xbf16>
    %c0_3 = arith.constant 0 : index
    %c0_4 = arith.constant 0 : index
    %5 = vector.load %arg3[%c0_3, %c0_4] : memref<128x128xbf16, #tpu.memory_space<vmem>>, vector<128x128xbf16>
    %cst = arith.constant dense<0.000000e+00> : vector<64x128xf32>
    %6 = tpu.matmul %4, %5, %cst {dimension_numbers = #tpu.dot_dimension_numbers<[1], [0], [0], [1], [0, 0, 1, 1], [], []>} : vector<64x128xbf16>, vector<128x128xbf16>, vector<64x128xf32> -> vector<64x128xf32>
    %c0_5 = arith.constant 0 : index
    %c0_6 = arith.constant 0 : index
    %7 = vector.load %arg5[%c0_5, %c0_6] : memref<1x128xf32, #tpu.memory_space<vmem>>, vector<1x128xf32>
    %8 = vector.broadcast %7 : vector<1x128xf32> to vector<64x128xf32>
    %9 = arith.addf %6, %8 : vector<64x128xf32>
    %10 = vector.shape_cast %9 : vector<64x128xf32> to vector<8x8x128xf32>
    %c0_7 = arith.constant 0 : index
    %c0_8 = arith.constant 0 : index
    %c0_9 = arith.constant 0 : index
    %11 = vector.load %arg8[%c0_7, %c0_8, %c0_9] : memref<8x8x128xf32, #tpu.memory_space<vmem>>, vector<8x8x128xf32>
    tpu.vector_store %arg8[%c0_7, %c0_8, %c0_9], %10 {strides = array<i32>} : memref<8x8x128xf32, #tpu.memory_space<vmem>>, vector<8x8x128xf32>,
    %c0_10 = arith.constant 0 : index
    %c0_11 = arith.constant 0 : index
    %12 = vector.load %arg4[%c0_10, %c0_11] : memref<128x128xbf16, #tpu.memory_space<vmem>>, vector<128x128xbf16>
    %c0_12 = arith.constant 0 : index
    %c0_13 = arith.constant 0 : index
    %13 = vector.load %arg7[%c0_12, %c0_13] : memref<8x128xf32, #tpu.memory_space<vmem>>, vector<8x128xf32>
    %c0_i32_14 = arith.constant 0 : i32
    %14 = arith.index_cast %c0_i32_14 : i32 to index
    %c0_15 = arith.constant 0 : index
    %c0_16 = arith.constant 0 : index
    %15 = vector.load %arg8[%14, %c0_15, %c0_16] : memref<8x8x128xf32, #tpu.memory_space<vmem>>, vector<1x8x128xf32>
    %16 = vector.shape_cast %15 : vector<1x8x128xf32> to vector<8x128xf32>
    %17 = arith.truncf %13 : vector<8x128xf32> to vector<8x128xbf16>
    %cst_17 = arith.constant dense<0.000000e+00> : vector<8x128xf32>
    %18 = tpu.matmul %17, %12, %cst_17 {dimension_numbers = #tpu.dot_dimension_numbers<[1], [0], [0], [1], [0, 0, 1, 1], [], []>} : vector<8x128xbf16>, vector<128x128xbf16>, vector<8x128xf32> -> vector<8x128xf32>
    %19 = arith.addf %16, %18 : vector<8x128xf32>
    %20 = math.tanh %19 : vector<8x128xf32>
    %c1_i32 = arith.constant 1 : i32
    %21 = arith.index_cast %c1_i32 : i32 to index
    %c0_18 = arith.constant 0 : index
    %c0_19 = arith.constant 0 : index
    %22 = vector.load %arg8[%21, %c0_18, %c0_19] : memref<8x8x128xf32, #tpu.memory_space<vmem>>, vector<1x8x128xf32>
    %23 = vector.shape_cast %22 : vector<1x8x128xf32> to vector<8x128xf32>
    %24 = arith.truncf %20 : vector<8x128xf32> to vector<8x128xbf16>
    %cst_20 = arith.constant dense<0.000000e+00> : vector<8x128xf32>
    %25 = tpu.matmul %24, %12, %cst_20 {dimension_numbers = #tpu.dot_dimension_numbers<[1], [0], [0], [1], [0, 0, 1, 1], [], []>} : vector<8x128xbf16>, vector<128x128xbf16>, vector<8x128xf32> -> vector<8x128xf32>
    %26 = arith.addf %23, %25 : vector<8x128xf32>
    %27 = math.tanh %26 : vector<8x128xf32>
    %c2_i32 = arith.constant 2 : i32
    %28 = arith.index_cast %c2_i32 : i32 to index
    %c0_21 = arith.constant 0 : index
    %c0_22 = arith.constant 0 : index
    %29 = vector.load %arg8[%28, %c0_21, %c0_22] : memref<8x8x128xf32, #tpu.memory_space<vmem>>, vector<1x8x128xf32>
    %30 = vector.shape_cast %29 : vector<1x8x128xf32> to vector<8x128xf32>
    %31 = arith.truncf %27 : vector<8x128xf32> to vector<8x128xbf16>
    %cst_23 = arith.constant dense<0.000000e+00> : vector<8x128xf32>
    %32 = tpu.matmul %31, %12, %cst_23 {dimension_numbers = #tpu.dot_dimension_numbers<[1], [0], [0], [1], [0, 0, 1, 1], [], []>} : vector<8x128xbf16>, vector<128x128xbf16>, vector<8x128xf32> -> vector<8x128xf32>
    %33 = arith.addf %30, %32 : vector<8x128xf32>
    %34 = math.tanh %33 : vector<8x128xf32>
    %c3_i32 = arith.constant 3 : i32
    %35 = arith.index_cast %c3_i32 : i32 to index
    %c0_24 = arith.constant 0 : index
    %c0_25 = arith.constant 0 : index
    %36 = vector.load %arg8[%35, %c0_24, %c0_25] : memref<8x8x128xf32, #tpu.memory_space<vmem>>, vector<1x8x128xf32>
    %37 = vector.shape_cast %36 : vector<1x8x128xf32> to vector<8x128xf32>
    %38 = arith.truncf %34 : vector<8x128xf32> to vector<8x128xbf16>
    %cst_26 = arith.constant dense<0.000000e+00> : vector<8x128xf32>
    %39 = tpu.matmul %38, %12, %cst_26 {dimension_numbers = #tpu.dot_dimension_numbers<[1], [0], [0], [1], [0, 0, 1, 1], [], []>} : vector<8x128xbf16>, vector<128x128xbf16>, vector<8x128xf32> -> vector<8x128xf32>
    %40 = arith.addf %37, %39 : vector<8x128xf32>
    %41 = math.tanh %40 : vector<8x128xf32>
    %c4_i32 = arith.constant 4 : i32
    %42 = arith.index_cast %c4_i32 : i32 to index
    %c0_27 = arith.constant 0 : index
    %c0_28 = arith.constant 0 : index
    %43 = vector.load %arg8[%42, %c0_27, %c0_28] : memref<8x8x128xf32, #tpu.memory_space<vmem>>, vector<1x8x128xf32>
    %44 = vector.shape_cast %43 : vector<1x8x128xf32> to vector<8x128xf32>
    %45 = arith.truncf %41 : vector<8x128xf32> to vector<8x128xbf16>
    %cst_29 = arith.constant dense<0.000000e+00> : vector<8x128xf32>
    %46 = tpu.matmul %45, %12, %cst_29 {dimension_numbers = #tpu.dot_dimension_numbers<[1], [0], [0], [1], [0, 0, 1, 1], [], []>} : vector<8x128xbf16>, vector<128x128xbf16>, vector<8x128xf32> -> vector<8x128xf32>
    %47 = arith.addf %44, %46 : vector<8x128xf32>
    %48 = math.tanh %47 : vector<8x128xf32>
    %c5_i32 = arith.constant 5 : i32
    %49 = arith.index_cast %c5_i32 : i32 to index
    %c0_30 = arith.constant 0 : index
    %c0_31 = arith.constant 0 : index
    %50 = vector.load %arg8[%49, %c0_30, %c0_31] : memref<8x8x128xf32, #tpu.memory_space<vmem>>, vector<1x8x128xf32>
    %51 = vector.shape_cast %50 : vector<1x8x128xf32> to vector<8x128xf32>
    %52 = arith.truncf %48 : vector<8x128xf32> to vector<8x128xbf16>
    %cst_32 = arith.constant dense<0.000000e+00> : vector<8x128xf32>
    %53 = tpu.matmul %52, %12, %cst_32 {dimension_numbers = #tpu.dot_dimension_numbers<[1], [0], [0], [1], [0, 0, 1, 1], [], []>} : vector<8x128xbf16>, vector<128x128xbf16>, vector<8x128xf32> -> vector<8x128xf32>
    %54 = arith.addf %51, %53 : vector<8x128xf32>
    %55 = math.tanh %54 : vector<8x128xf32>
    %c6_i32 = arith.constant 6 : i32
    %56 = arith.index_cast %c6_i32 : i32 to index
    %c0_33 = arith.constant 0 : index
    %c0_34 = arith.constant 0 : index
    %57 = vector.load %arg8[%56, %c0_33, %c0_34] : memref<8x8x128xf32, #tpu.memory_space<vmem>>, vector<1x8x128xf32>
    %58 = vector.shape_cast %57 : vector<1x8x128xf32> to vector<8x128xf32>
    %59 = arith.truncf %55 : vector<8x128xf32> to vector<8x128xbf16>
    %cst_35 = arith.constant dense<0.000000e+00> : vector<8x128xf32>
    %60 = tpu.matmul %59, %12, %cst_35 {dimension_numbers = #tpu.dot_dimension_numbers<[1], [0], [0], [1], [0, 0, 1, 1], [], []>} : vector<8x128xbf16>, vector<128x128xbf16>, vector<8x128xf32> -> vector<8x128xf32>
    %61 = arith.addf %58, %60 : vector<8x128xf32>
    %62 = math.tanh %61 : vector<8x128xf32>
    %c7_i32 = arith.constant 7 : i32
    %63 = arith.index_cast %c7_i32 : i32 to index
    %c0_36 = arith.constant 0 : index
    %c0_37 = arith.constant 0 : index
    %64 = vector.load %arg8[%63, %c0_36, %c0_37] : memref<8x8x128xf32, #tpu.memory_space<vmem>>, vector<1x8x128xf32>
    %65 = vector.shape_cast %64 : vector<1x8x128xf32> to vector<8x128xf32>
    %66 = arith.truncf %62 : vector<8x128xf32> to vector<8x128xbf16>
    %cst_38 = arith.constant dense<0.000000e+00> : vector<8x128xf32>
    %67 = tpu.matmul %66, %12, %cst_38 {dimension_numbers = #tpu.dot_dimension_numbers<[1], [0], [0], [1], [0, 0, 1, 1], [], []>} : vector<8x128xbf16>, vector<128x128xbf16>, vector<8x128xf32> -> vector<8x128xf32>
    %68 = arith.addf %65, %67 : vector<8x128xf32>
    %69 = math.tanh %68 : vector<8x128xf32>
    %c8_i32 = arith.constant 8 : i32
    %c0_39 = arith.constant 0 : index
    %c0_40 = arith.constant 0 : index
    %70 = vector.load %arg7[%c0_39, %c0_40] : memref<8x128xf32, #tpu.memory_space<vmem>>, vector<8x128xf32>
    tpu.vector_store %arg7[%c0_39, %c0_40], %69 {strides = array<i32>} : memref<8x128xf32, #tpu.memory_space<vmem>>, vector<8x128xf32>,
    %c0_i32_41 = arith.constant 0 : i32
    %71 = arith.cmpi eq, %arg1, %c0_i32_41 : i32
    %72 = arith.extui %71 : i1 to i32
    %c0_i32_42 = arith.constant 0 : i32
    %73 = arith.cmpi ne, %72, %c0_i32_42 : i32
    scf.if %73 {
      %c0_43 = arith.constant 0 : index
      %c0_44 = arith.constant 0 : index
      %74 = vector.load %arg6[%c0_43, %c0_44] : memref<8x128xf32, #tpu.memory_space<vmem>>, vector<8x128xf32>
      tpu.vector_store %arg6[%c0_43, %c0_44], %69 {strides = array<i32>} : memref<8x128xf32, #tpu.memory_space<vmem>>, vector<8x128xf32>,
    } else {
    }
    return
  }
  func.func @transform_0(%arg0: i32, %arg1: i32) -> (i32, i32, i32) {
    %c0_i32 = arith.constant 0 : i32
    %c0_i32_0 = arith.constant 0 : i32
    return %arg1, %arg0, %c0_i32 : i32, i32, i32
  }
  func.func @transform_1(%arg0: i32, %arg1: i32) -> (i32, i32) {
    %c0_i32 = arith.constant 0 : i32
    %c0_i32_0 = arith.constant 0 : i32
    %c0_i32_1 = arith.constant 0 : i32
    return %c0_i32, %c0_i32_0 : i32, i32
  }
  func.func @transform_2(%arg0: i32, %arg1: i32) -> (i32, i32) {
    %c0_i32 = arith.constant 0 : i32
    %c0_i32_0 = arith.constant 0 : i32
    %c0_i32_1 = arith.constant 0 : i32
    return %c0_i32, %c0_i32_0 : i32, i32
  }
  func.func @transform_3(%arg0: i32, %arg1: i32) -> (i32, i32) {
    %c0_i32 = arith.constant 0 : i32
    %c0_i32_0 = arith.constant 0 : i32
    %c0_i32_1 = arith.constant 0 : i32
    return %c0_i32, %c0_i32_0 : i32, i32
  }
  func.func @transform_4(%arg0: i32, %arg1: i32) -> (i32, i32) {
    %c0_i32 = arith.constant 0 : i32
    %c0_i32_0 = arith.constant 0 : i32
    return %arg0, %c0_i32 : i32, i32
  }
}

</mosaic_0001>

<llo_original>
// kernel: tpu_custom_call.1
$region0: #{tpu_custom_call.1}
  #allocation0 [shape = 'u32[]', space=smem, size = 0x4, offset = 0x4, fixed_abs, tag = 'smem constant byte address 0x4 - core index']
  #allocation1 [shape = 'u32[144,128]{1,0:T(1,128)}', space=vmem, size = 0x12000, scoped, tag = 'internal scratch']
  #allocation2 [shape = 'f32[8,128]{1,0:T(8,128)}', space=vmem, size = 0x1000, scoped, tag = 'scratch operand']
  #allocation3 [shape = 'f32[8,8,128]{2,1,0:T(8,128)}', space=vmem, size = 0x8000, scoped, tag = 'scratch operand']
  %s0 = inlined_call_operand.hbm [shape: bf16[8,8,128], index: 0, kind: input, shape index: {}]
  %s1 = inlined_call_operand.hbm [shape: bf16[128,128], index: 1, kind: input, shape index: {}]
  %s2 = inlined_call_operand.hbm [shape: bf16[128,128], index: 2, kind: input, shape index: {}]
  %s3 = inlined_call_operand.vmem [shape: f32[1,128], index: 3, kind: input, shape index: {}]
  %s4 = inlined_call_operand.hbm [shape: f32[8,128], index: 4, kind: output, shape index: {}]
  %s5 = sld [smem:[#allocation0]]
  $region46: #{tpu_custom_call.1} parent=0
    _
  %s7 = ssub.s32 1, %s5
  %s8 = scalar_select 0, %s7, %s5
  $region1: #{tpu_custom_call.1} parent=0
    #allocation4 [shape = 'u8[16384]{0}', space=vmem, size = 0x4000, scoped, tag = 'input window, operand 0, single buffered']
    #allocation5 [shape = 's32[1]{0}', space=sflag, size = 0x4, scoped, tag = 'scoped memory for tpu_custom_call.1']
    #allocation6 [shape = 's32[1]{0}', space=sflag, size = 0x4, scoped, tag = 'scoped memory for tpu_custom_call.1']
    #allocation7 [shape = 'u8[32768]{0}', space=vmem, size = 0x8000, scoped, tag = 'input window, operand 1, single buffered']
    #allocation8 [shape = 's32[1]{0}', space=sflag, size = 0x4, scoped, tag = 'scoped memory for tpu_custom_call.1']
    #allocation9 [shape = 'u8[32768]{0}', space=vmem, size = 0x8000, scoped, tag = 'input window, operand 2, single buffered']
    #allocation10 [shape = 'u8[4096]{0}', space=vmem, size = 0x1000, scoped, tag = 'output window, operand 0, single buffered']
    %9 = vsyncpa [#allocation5], 0
    %10 = vsyncpa [#allocation8], 0
    %11 = vsyncpa [#allocation6], 0
    // Predicated region
    $region2: #{tpu_custom_call.1} parent=1 // pred_check
      _
    $region3: #{tpu_custom_call.1} parent=1 // pred_check_branch
      %13 = sbr.rel (0) target = $region5
    $region4: #{tpu_custom_call.1} parent=1 // pred_region
      %s15 = ssub.s32 512, 512
      %16 = vsyncadd [#allocation5], %s15
      %s17 = sshll.u32 [#allocation4], 4
      %s18 = int_to_ptr.vmem [resolvable:$true] %s17
      %23 = dma.hbm_to_vmem [thread:$0]  %s0, 512, %s18, [#allocation5], 64, 64, 4
    $region5: #{tpu_custom_call.1} parent=1 // pred_fallthru
      _
    // Predicated region
    $region6: #{tpu_custom_call.1} parent=1 // pred_check
      _
    $region7: #{tpu_custom_call.1} parent=1 // pred_check_branch
      %25 = sbr.rel (0) target = $region9
    $region8: #{tpu_custom_call.1} parent=1 // pred_region
      %s27 = ssub.s32 1024, 1024
      %28 = vsyncadd [#allocation8], %s27
      %s29 = sshll.u32 [#allocation7], 4
      %s30 = int_to_ptr.vmem [resolvable:$true] %s29
      %35 = dma.hbm_to_vmem [thread:$0]  %s1, 1024, %s30, [#allocation8], 64, 64, 4
    $region9: #{tpu_custom_call.1} parent=1 // pred_fallthru
      _
    // Predicated region
    $region10: #{tpu_custom_call.1} parent=1 // pred_check
      _
    $region11: #{tpu_custom_call.1} parent=1 // pred_check_branch
      %37 = sbr.rel (0) target = $region13
    $region12: #{tpu_custom_call.1} parent=1 // pred_region
      %s39 = ssub.s32 1024, 1024
      %40 = vsyncadd [#allocation8], %s39
      %s41 = sshll.u32 [#allocation9], 4
      %s42 = int_to_ptr.vmem [resolvable:$true] %s41
      %47 = dma.hbm_to_vmem [thread:$0]  %s2, 1024, %s42, [#allocation8], 64, 64, 4
    $region13: #{tpu_custom_call.1} parent=1 // pred_fallthru
      _
    // Predicated region
    $region14: #{tpu_custom_call.1} parent=1 // pred_check
      _
    $region15: #{tpu_custom_call.1} parent=1 // pred_check_branch
      %49 = sbr.rel (0) target = $region17
    $region16: #{tpu_custom_call.1} parent=1 // pred_region
      _
    $region17: #{tpu_custom_call.1} parent=1 // pred_fallthru
      _
    // Predicated region
    $region18: #{tpu_custom_call.1} parent=1 // pred_check
      _
    $region19: #{tpu_custom_call.1} parent=1 // pred_check_branch
      %51 = sbr.rel (0) target = $region21
    $region20: #{tpu_custom_call.1} parent=1 // pred_region
      %52 = dma.done [#allocation5], 512
    $region21: #{tpu_custom_call.1} parent=1 // pred_fallthru
      _
    // Predicated region
    $region22: #{tpu_custom_call.1} parent=1 // pred_check
      _
    $region23: #{tpu_custom_call.1} parent=1 // pred_check_branch
      %54 = sbr.rel (0) target = $region25
    $region24: #{tpu_custom_call.1} parent=1 // pred_region
      %55 = dma.done [#allocation8], 1024
    $region25: #{tpu_custom_call.1} parent=1 // pred_fallthru
      _
    // Predicated region
    $region26: #{tpu_custom_call.1} parent=1 // pred_check
      _
    $region27: #{tpu_custom_call.1} parent=1 // pred_check_branch
      %57 = sbr.rel (0) target = $region29
    $region28: #{tpu_custom_call.1} parent=1 // pred_region
      %58 = dma.done [#allocation8], 1024
    $region29: #{tpu_custom_call.1} parent=1 // pred_fallthru
      _
    %p60 = scmp.eq.s32.totalorder 0, 0
    // Predicated region
    $region30: #{tpu_custom_call.1} parent=1 // pred_check
      %p61 = pneg %p60
    $region31: #{tpu_custom_call.1} parent=1 // pred_check_branch
      %63 = sbr.rel (%p61) target = $region33
    $region32: #{tpu_custom_call.1} parent=1 // pred_region
      %64 = vst [vmem:[#allocation2] sm:$0xff] 0.0
    $region33: #{tpu_custom_call.1} parent=1 // pred_fallthru
      _
    %v65 = vld [vmem:[#allocation4] sm:$0xf]
    %v66 = vld [vmem:[#allocation4 + $0x4] sm:$0xf]
    %v67 = vld [vmem:[#allocation4 + $0x8] sm:$0xf]
    %v68 = vld [vmem:[#allocation4 + $0xc] sm:$0xf]
    %v69 = vld [vmem:[#allocation4 + $0x10] sm:$0xf]
    %v70 = vld [vmem:[#allocation4 + $0x14] sm:$0xf]
    %v71 = vld [vmem:[#allocation4 + $0x18] sm:$0xf]
    %v72 = vld [vmem:[#allocation4 + $0x1c] sm:$0xf]
    %v73 = vld [vmem:[#allocation7] sm:$0xf]
    %v74 = vld [vmem:[#allocation7 + $0x4] sm:$0xf]
    %v75 = vld [vmem:[#allocation7 + $0x8] sm:$0xf]
    %v76 = vld [vmem:[#allocation7 + $0xc] sm:$0xf]
    %v77 = vld [vmem:[#allocation7 + $0x10] sm:$0xf]
    %v78 = vld [vmem:[#allocation7 + $0x14] sm:$0xf]
    %v79 = vld [vmem:[#allocation7 + $0x18] sm:$0xf]
    %v80 = vld [vmem:[#allocation7 + $0x1c] sm:$0xf]
    %v81 = vld [vmem:[#allocation7 + $0x20] sm:$0xf]
    %v82 = vld [vmem:[#allocation7 + $0x24] sm:$0xf]
    %v83 = vld [vmem:[#allocation7 + $0x28] sm:$0xf]
    %v84 = vld [vmem:[#allocation7 + $0x2c] sm:$0xf]
    %v85 = vld [vmem:[#allocation7 + $0x30] sm:$0xf]
    %v86 = vld [vmem:[#allocation7 + $0x34] sm:$0xf]
    %v87 = vld [vmem:[#allocation7 + $0x38] sm:$0xf]
    %v88 = vld [vmem:[#allocation7 + $0x3c] sm:$0xf]
    %v89 = vld [vmem:[%s3] sm:$0x1]
    %v91 = vlaneseq
    %v92 = vshrl.u32 %v91, 7
    %v93 = vsub.s32 0, %v92
    %v94 = vrot.slane %v89, %v93
    %v104 = vunpack.c.l.b16 %v65
    %v105 = vunpack.c.l.b16 %v66
    %v106 = vunpack.c.l.b16 %v67
    %v107 = vunpack.c.l.b16 %v68
    %v108 = vunpack.c.l.b16 %v69
    %v109 = vunpack.c.l.b16 %v70
    %v110 = vunpack.c.l.b16 %v71
    %v111 = vunpack.c.l.b16 %v72
    %v112 = vpack.c.b16 %v105, %v104
    %v113 = vpack.c.b16 %v107, %v106
    %v114 = vpack.c.b16 %v109, %v108
    %v115 = vpack.c.b16 %v111, %v110
    %v136 = vunpack.c.l.b16 %v73
    %v137 = vunpack.c.l.b16 %v74
    %v138 = vunpack.c.l.b16 %v75
    %v139 = vunpack.c.l.b16 %v76
    %v140 = vunpack.c.l.b16 %v77
    %v141 = vunpack.c.l.b16 %v78
    %v142 = vunpack.c.l.b16 %v79
    %v143 = vunpack.c.l.b16 %v80
    %v144 = vunpack.c.l.b16 %v81
    %v145 = vunpack.c.l.b16 %v82
    %v146 = vunpack.c.l.b16 %v83
    %v147 = vunpack.c.l.b16 %v84
    %v148 = vunpack.c.l.b16 %v85
    %v149 = vunpack.c.l.b16 %v86
    %v150 = vunpack.c.l.b16 %v87
    %v151 = vunpack.c.l.b16 %v88
    %v152 = vpack.c.b16 %v137, %v136
    %v153 = vpack.c.b16 %v139, %v138
    %v154 = vpack.c.b16 %v141, %v140
    %v155 = vpack.c.b16 %v143, %v142
    %v156 = vpack.c.b16 %v145, %v144
    %v157 = vpack.c.b16 %v147, %v146
    %v158 = vpack.c.b16 %v149, %v148
    %v159 = vpack.c.b16 %v151, %v150
    %168 = vmatprep.subr.bf16.mxu0 0
    %169 = vmatpush1.bf16.msra.mxu0 %v159
    %170 = vmatprep.subr.bf16.mxu0 0
    %171 = vmatpush1.bf16.msra.mxu0 %v158
    %172 = vmatprep.subr.bf16.mxu0 0
    %173 = vmatpush1.bf16.msra.mxu0 %v157
    %174 = vmatprep.subr.bf16.mxu0 0
    %175 = vmatpush1.bf16.msra.mxu0 %v156
    %176 = vmatprep.subr.bf16.mxu0 0
    %177 = vmatpush1.bf16.msra.mxu0 %v155
    %178 = vmatprep.subr.bf16.mxu0 0
    %179 = vmatpush1.bf16.msra.mxu0 %v154
    %180 = vmatprep.subr.bf16.mxu0 0
    %181 = vmatpush1.bf16.msra.mxu0 %v153
    %182 = vmatprep.subr.bf16.mxu0 0
    %183 = vmatpush1.bf16.msra.mxu0 %v152
    %184 = vmatprep.subr.bf16.mxu0 0
    %185 = vmatpush2.bf16.msra.mxu0 0
    %186 = vmatprep.subr.bf16.mxu0 0
    %187 = vmatpush2.bf16.msra.mxu0 0
    %188 = vmatprep.subr.bf16.mxu0 0
    %189 = vmatpush2.bf16.msra.mxu0 0
    %190 = vmatprep.subr.bf16.mxu0 0
    %191 = vmatpush2.bf16.msra.mxu0 0
    %192 = vmatprep.subr.bf16.mxu0 0
    %193 = vmatpush2.bf16.msra.mxu0 0
    %194 = vmatprep.subr.bf16.mxu0 0
    %195 = vmatpush2.bf16.msra.mxu0 0
    %196 = vmatprep.subr.bf16.mxu0 0
    %197 = vmatpush2.bf16.msra.mxu0 0
    %198 = vmatprep.subr.bf16.mxu0 0
    %199 = vmatpush2.bf16.msra.mxu0 0
    %200 = vmatprep.mubr.bf16.mxu0 0
    %201 = vmatmul.mubr.bf16.gmra.mxu0 %v112
    %v202 = vpop.f32.mrf.mxu0
    %v203 = vadd.f32 %v94, %v202
    %v204 = vpop.f32.mrf.mxu0
    %v205 = vpop.f32.mrf.mxu0
    %v206 = vadd.f32 %v94, %v205
    %v207 = vpop.f32.mrf.mxu0
    %208 = vmatprep.mubr.bf16.mxu0 0
    %209 = vmatmul.mubr.bf16.gmra.mxu0 %v113
    %v210 = vpop.f32.mrf.mxu0
    %v211 = vadd.f32 %v94, %v210
    %v212 = vpop.f32.mrf.mxu0
    %v213 = vpop.f32.mrf.mxu0
    %v214 = vadd.f32 %v94, %v213
    %v215 = vpop.f32.mrf.mxu0
    %216 = vmatprep.mubr.bf16.mxu0 0
    %217 = vmatmul.mubr.bf16.gmra.mxu0 %v114
    %v218 = vpop.f32.mrf.mxu0
    %v219 = vadd.f32 %v94, %v218
    %v220 = vpop.f32.mrf.mxu0
    %v221 = vpop.f32.mrf.mxu0
    %v222 = vadd.f32 %v94, %v221
    %v223 = vpop.f32.mrf.mxu0
    %224 = vmatprep.mubr.bf16.mxu0 0
    %225 = vmatmul.mubr.bf16.gmra.mxu0 %v115
    %v226 = vpop.f32.mrf.mxu0
    %v227 = vadd.f32 %v94, %v226
    %v228 = vpop.f32.mrf.mxu0
    %v229 = vpop.f32.mrf.mxu0
    %v230 = vadd.f32 %v94, %v229
    %v231 = vpop.f32.mrf.mxu0
    %232 = vdwg.mxu0
    %233 = vst [vmem:[#allocation3] sm:$0xff] %v203
    %234 = vst [vmem:[#allocation3 + $0x8] sm:$0xff] %v206
    %235 = vst [vmem:[#allocation3 + $0x10] sm:$0xff] %v211
    %236 = vst [vmem:[#allocation3 + $0x18] sm:$0xff] %v214
    %237 = vst [vmem:[#allocation3 + $0x20] sm:$0xff] %v219
    %238 = vst [vmem:[#allocation3 + $0x28] sm:$0xff] %v222
    %239 = vst [vmem:[#allocation3 + $0x30] sm:$0xff] %v227
    %240 = vst [vmem:[#allocation3 + $0x38] sm:$0xff] %v230
    %v241 = vld [vmem:[#allocation9] sm:$0xf]
    %v242 = vld [vmem:[#allocation9 + $0x4] sm:$0xf]
    %v243 = vld [vmem:[#allocation9 + $0x8] sm:$0xf]
    %v244 = vld [vmem:[#allocation9 + $0xc] sm:$0xf]
    %v245 = vld [vmem:[#allocation9 + $0x10] sm:$0xf]
    %v246 = vld [vmem:[#allocation9 + $0x14] sm:$0xf]
    %v247 = vld [vmem:[#allocation9 + $0x18] sm:$0xf]
    %v248 = vld [vmem:[#allocation9 + $0x1c] sm:$0xf]
    %v249 = vld [vmem:[#allocation9 + $0x20] sm:$0xf]
    %v250 = vld [vmem:[#allocation9 + $0x24] sm:$0xf]
    %v251 = vld [vmem:[#allocation9 + $0x28] sm:$0xf]
    %v252 = vld [vmem:[#allocation9 + $0x2c] sm:$0xf]
    %v253 = vld [vmem:[#allocation9 + $0x30] sm:$0xf]
    %v254 = vld [vmem:[#allocation9 + $0x34] sm:$0xf]
    %v255 = vld [vmem:[#allocation9 + $0x38] sm:$0xf]
    %v256 = vld [vmem:[#allocation9 + $0x3c] sm:$0xf]
    %v257 = vld [vmem:[#allocation2] sm:$0xff]
    %v258 = vld [vmem:[#allocation3] sm:$0xff]
    %v259 = vpack.c.bf16 %v257, %v257
    %v276 = vunpack.c.l.b16 %v241
    %v277 = vunpack.c.l.b16 %v242
    %v278 = vunpack.c.l.b16 %v243
    %v279 = vunpack.c.l.b16 %v244
    %v280 = vunpack.c.l.b16 %v245
    %v281 = vunpack.c.l.b16 %v246
    %v282 = vunpack.c.l.b16 %v247
    %v283 = vunpack.c.l.b16 %v248
    %v284 = vunpack.c.l.b16 %v249
    %v285 = vunpack.c.l.b16 %v250
    %v286 = vunpack.c.l.b16 %v251
    %v287 = vunpack.c.l.b16 %v252
    %v288 = vunpack.c.l.b16 %v253
    %v289 = vunpack.c.l.b16 %v254
    %v290 = vunpack.c.l.b16 %v255
    %v291 = vunpack.c.l.b16 %v256
    %v292 = vpack.c.b16 %v277, %v276
    %v293 = vpack.c.b16 %v279, %v278
    %v294 = vpack.c.b16 %v281, %v280
    %v295 = vpack.c.b16 %v283, %v282
    %v296 = vpack.c.b16 %v285, %v284
    %v297 = vpack.c.b16 %v287, %v286
    %v298 = vpack.c.b16 %v289, %v288
    %v299 = vpack.c.b16 %v291, %v290
    %308 = vmatprep.subr.bf16.mxu0 0
    %309 = vmatpush1.bf16.msra.mxu0 %v299
    %310 = vmatprep.subr.bf16.mxu0 0
    %311 = vmatpush1.bf16.msra.mxu0 %v298
    %312 = vmatprep.subr.bf16.mxu0 0
    %313 = vmatpush1.bf16.msra.mxu0 %v297
    %314 = vmatprep.subr.bf16.mxu0 0
    %315 = vmatpush1.bf16.msra.mxu0 %v296
    %316 = vmatprep.subr.bf16.mxu0 0
    %317 = vmatpush1.bf16.msra.mxu0 %v295
    %318 = vmatprep.subr.bf16.mxu0 0
    %319 = vmatpush1.bf16.msra.mxu0 %v294
    %320 = vmatprep.subr.bf16.mxu0 0
    %321 = vmatpush1.bf16.msra.mxu0 %v293
    %322 = vmatprep.subr.bf16.mxu0 0
    %323 = vmatpush1.bf16.msra.mxu0 %v292
    %324 = vmatprep.subr.bf16.mxu0 0
    %325 = vmatpush2.bf16.msra.mxu0 0
    %326 = vmatprep.subr.bf16.mxu0 0
    %327 = vmatpush2.bf16.msra.mxu0 0
    %328 = vmatprep.subr.bf16.mxu0 0
    %329 = vmatpush2.bf16.msra.mxu0 0
    %330 = vmatprep.subr.bf16.mxu0 0
    %331 = vmatpush2.bf16.msra.mxu0 0
    %332 = vmatprep.subr.bf16.mxu0 0
    %333 = vmatpush2.bf16.msra.mxu0 0
    %334 = vmatprep.subr.bf16.mxu0 0
    %335 = vmatpush2.bf16.msra.mxu0 0
    %336 = vmatprep.subr.bf16.mxu0 0
    %337 = vmatpush2.bf16.msra.mxu0 0
    %338 = vmatprep.subr.bf16.mxu0 0
    %339 = vmatpush2.bf16.msra.mxu0 0
    %340 = vmatprep.mubr.bf16.mxu0 0
    %341 = vmatmul.mubr.bf16.gmra.mxu0 %v259
    %v342 = vpop.f32.mrf.mxu0
    %v343 = vadd.f32 0.0, %v342
    %v344 = vpop.f32.mrf.mxu0
    %v345 = vpop.f32.mrf.mxu0
    %v346 = vpop.f32.mrf.mxu0
    %347 = vdwg.mxu0
    %v348 = vadd.f32 %v258, %v343
    %v349 = vtanh.pop %v348
    %s350 = scalar_lea.vmem [#allocation3], 8
    %v351 = vld [vmem:[%s350] sm:$0xff]
    %v352 = vpack.c.bf16 %v349, %v349
    %353 = vmatprep.subr.bf16.mxu0 0
    %354 = vmatpush1.bf16.msra.mxu0 %v299
    %355 = vmatprep.subr.bf16.mxu0 0
    %356 = vmatpush1.bf16.msra.mxu0 %v298
    %357 = vmatprep.subr.bf16.mxu0 0
    %358 = vmatpush1.bf16.msra.mxu0 %v297
    %359 = vmatprep.subr.bf16.mxu0 0
    %360 = vmatpush1.bf16.msra.mxu0 %v296
    %361 = vmatprep.subr.bf16.mxu0 0
    %362 = vmatpush1.bf16.msra.mxu0 %v295
    %363 = vmatprep.subr.bf16.mxu0 0
    %364 = vmatpush1.bf16.msra.mxu0 %v294
    %365 = vmatprep.subr.bf16.mxu0 0
    %366 = vmatpush1.bf16.msra.mxu0 %v293
    %367 = vmatprep.subr.bf16.mxu0 0
    %368 = vmatpush1.bf16.msra.mxu0 %v292
    %369 = vmatprep.subr.bf16.mxu0 0
    %370 = vmatpush2.bf16.msra.mxu0 0
    %371 = vmatprep.subr.bf16.mxu0 0
    %372 = vmatpush2.bf16.msra.mxu0 0
    %373 = vmatprep.subr.bf16.mxu0 0
    %374 = vmatpush2.bf16.msra.mxu0 0
    %375 = vmatprep.subr.bf16.mxu0 0
    %376 = vmatpush2.bf16.msra.mxu0 0
    %377 = vmatprep.subr.bf16.mxu0 0
    %378 = vmatpush2.bf16.msra.mxu0 0
    %379 = vmatprep.subr.bf16.mxu0 0
    %380 = vmatpush2.bf16.msra.mxu0 0
    %381 = vmatprep.subr.bf16.mxu0 0
    %382 = vmatpush2.bf16.msra.mxu0 0
    %383 = vmatprep.subr.bf16.mxu0 0
    %384 = vmatpush2.bf16.msra.mxu0 0
    %385 = vmatprep.mubr.bf16.mxu0 0
    %386 = vmatmul.mubr.bf16.gmra.mxu0 %v352
    %v387 = vpop.f32.mrf.mxu0
    %v388 = vadd.f32 0.0, %v387
    %v389 = vpop.f32.mrf.mxu0
    %v390 = vpop.f32.mrf.mxu0
    %v391 = vpop.f32.mrf.mxu0
    %392 = vdwg.mxu0
    %v393 = vadd.f32 %v351, %v388
    %v394 = vtanh.pop %v393
    %s395 = scalar_lea.vmem [#allocation3], 16
    %v396 = vld [vmem:[%s395] sm:$0xff]
    %v397 = vpack.c.bf16 %v394, %v394
    %398 = vmatprep.subr.bf16.mxu0 0
    %399 = vmatpush1.bf16.msra.mxu0 %v299
    %400 = vmatprep.subr.bf16.mxu0 0
    %401 = vmatpush1.bf16.msra.mxu0 %v298
    %402 = vmatprep.subr.bf16.mxu0 0
    %403 = vmatpush1.bf16.msra.mxu0 %v297
    %404 = vmatprep.subr.bf16.mxu0 0
    %405 = vmatpush1.bf16.msra.mxu0 %v296
    %406 = vmatprep.subr.bf16.mxu0 0
    %407 = vmatpush1.bf16.msra.mxu0 %v295
    %408 = vmatprep.subr.bf16.mxu0 0
    %409 = vmatpush1.bf16.msra.mxu0 %v294
    %410 = vmatprep.subr.bf16.mxu0 0
    %411 = vmatpush1.bf16.msra.mxu0 %v293
    %412 = vmatprep.subr.bf16.mxu0 0
    %413 = vmatpush1.bf16.msra.mxu0 %v292
    %414 = vmatprep.subr.bf16.mxu0 0
    %415 = vmatpush2.bf16.msra.mxu0 0
    %416 = vmatprep.subr.bf16.mxu0 0
    %417 = vmatpush2.bf16.msra.mxu0 0
    %418 = vmatprep.subr.bf16.mxu0 0
    %419 = vmatpush2.bf16.msra.mxu0 0
    %420 = vmatprep.subr.bf16.mxu0 0
    %421 = vmatpush2.bf16.msra.mxu0 0
    %422 = vmatprep.subr.bf16.mxu0 0
    %423 = vmatpush2.bf16.msra.mxu0 0
    %424 = vmatprep.subr.bf16.mxu0 0
    %425 = vmatpush2.bf16.msra.mxu0 0
    %426 = vmatprep.subr.bf16.mxu0 0
    %427 = vmatpush2.bf16.msra.mxu0 0
    %428 = vmatprep.subr.bf16.mxu0 0
    %429 = vmatpush2.bf16.msra.mxu0 0
    %430 = vmatprep.mubr.bf16.mxu0 0
    %431 = vmatmul.mubr.bf16.gmra.mxu0 %v397
    %v432 = vpop.f32.mrf.mxu0
    %v433 = vadd.f32 0.0, %v432
    %v434 = vpop.f32.mrf.mxu0
    %v435 = vpop.f32.mrf.mxu0
    %v436 = vpop.f32.mrf.mxu0
    %437 = vdwg.mxu0
    %v438 = vadd.f32 %v396, %v433
    %v439 = vtanh.pop %v438
    %s440 = scalar_lea.vmem [#allocation3], 24
    %v441 = vld [vmem:[%s440] sm:$0xff]
    %v442 = vpack.c.bf16 %v439, %v439
    %443 = vmatprep.subr.bf16.mxu0 0
    %444 = vmatpush1.bf16.msra.mxu0 %v299
    %445 = vmatprep.subr.bf16.mxu0 0
    %446 = vmatpush1.bf16.msra.mxu0 %v298
    %447 = vmatprep.subr.bf16.mxu0 0
    %448 = vmatpush1.bf16.msra.mxu0 %v297
    %449 = vmatprep.subr.bf16.mxu0 0
    %450 = vmatpush1.bf16.msra.mxu0 %v296
    %451 = vmatprep.subr.bf16.mxu0 0
    %452 = vmatpush1.bf16.msra.mxu0 %v295
    %453 = vmatprep.subr.bf16.mxu0 0
    %454 = vmatpush1.bf16.msra.mxu0 %v294
    %455 = vmatprep.subr.bf16.mxu0 0
    %456 = vmatpush1.bf16.msra.mxu0 %v293
    %457 = vmatprep.subr.bf16.mxu0 0
    %458 = vmatpush1.bf16.msra.mxu0 %v292
    %459 = vmatprep.subr.bf16.mxu0 0
    %460 = vmatpush2.bf16.msra.mxu0 0
    %461 = vmatprep.subr.bf16.mxu0 0
    %462 = vmatpush2.bf16.msra.mxu0 0
    %463 = vmatprep.subr.bf16.mxu0 0
    %464 = vmatpush2.bf16.msra.mxu0 0
    %465 = vmatprep.subr.bf16.mxu0 0
    %466 = vmatpush2.bf16.msra.mxu0 0
    %467 = vmatprep.subr.bf16.mxu0 0
    %468 = vmatpush2.bf16.msra.mxu0 0
    %469 = vmatprep.subr.bf16.mxu0 0
    %470 = vmatpush2.bf16.msra.mxu0 0
    %471 = vmatprep.subr.bf16.mxu0 0
    %472 = vmatpush2.bf16.msra.mxu0 0
    %473 = vmatprep.subr.bf16.mxu0 0
    %474 = vmatpush2.bf16.msra.mxu0 0
    %475 = vmatprep.mubr.bf16.mxu0 0
    %476 = vmatmul.mubr.bf16.gmra.mxu0 %v442
    %v477 = vpop.f32.mrf.mxu0
    %v478 = vadd.f32 0.0, %v477
    %v479 = vpop.f32.mrf.mxu0
    %v480 = vpop.f32.mrf.mxu0
    %v481 = vpop.f32.mrf.mxu0
    %482 = vdwg.mxu0
    %v483 = vadd.f32 %v441, %v478
    %v484 = vtanh.pop %v483
    %s485 = scalar_lea.vmem [#allocation3], 32
    %v486 = vld [vmem:[%s485] sm:$0xff]
    %v487 = vpack.c.bf16 %v484, %v484
    %488 = vmatprep.subr.bf16.mxu0 0
    %489 = vmatpush1.bf16.msra.mxu0 %v299
    %490 = vmatprep.subr.bf16.mxu0 0
    %491 = vmatpush1.bf16.msra.mxu0 %v298
    %492 = vmatprep.subr.bf16.mxu0 0
    %493 = vmatpush1.bf16.msra.mxu0 %v297
    %494 = vmatprep.subr.bf16.mxu0 0
    %495 = vmatpush1.bf16.msra.mxu0 %v296
    %496 = vmatprep.subr.bf16.mxu0 0
    %497 = vmatpush1.bf16.msra.mxu0 %v295
    %498 = vmatprep.subr.bf16.mxu0 0
    %499 = vmatpush1.bf16.msra.mxu0 %v294
    %500 = vmatprep.subr.bf16.mxu0 0
    %501 = vmatpush1.bf16.msra.mxu0 %v293
    %502 = vmatprep.subr.bf16.mxu0 0
    %503 = vmatpush1.bf16.msra.mxu0 %v292
    %504 = vmatprep.subr.bf16.mxu0 0
    %505 = vmatpush2.bf16.msra.mxu0 0
    %506 = vmatprep.subr.bf16.mxu0 0
    %507 = vmatpush2.bf16.msra.mxu0 0
    %508 = vmatprep.subr.bf16.mxu0 0
    %509 = vmatpush2.bf16.msra.mxu0 0
    %510 = vmatprep.subr.bf16.mxu0 0
    %511 = vmatpush2.bf16.msra.mxu0 0
    %512 = vmatprep.subr.bf16.mxu0 0
    %513 = vmatpush2.bf16.msra.mxu0 0
    %514 = vmatprep.subr.bf16.mxu0 0
    %515 = vmatpush2.bf16.msra.mxu0 0
    %516 = vmatprep.subr.bf16.mxu0 0
    %517 = vmatpush2.bf16.msra.mxu0 0
    %518 = vmatprep.subr.bf16.mxu0 0
    %519 = vmatpush2.bf16.msra.mxu0 0
    %520 = vmatprep.mubr.bf16.mxu0 0
    %521 = vmatmul.mubr.bf16.gmra.mxu0 %v487
    %v522 = vpop.f32.mrf.mxu0
    %v523 = vadd.f32 0.0, %v522
    %v524 = vpop.f32.mrf.mxu0
    %v525 = vpop.f32.mrf.mxu0
    %v526 = vpop.f32.mrf.mxu0
    %527 = vdwg.mxu0
    %v528 = vadd.f32 %v486, %v523
    %v529 = vtanh.pop %v528
    %s530 = scalar_lea.vmem [#allocation3], 40
    %v531 = vld [vmem:[%s530] sm:$0xff]
    %v532 = vpack.c.bf16 %v529, %v529
    %533 = vmatprep.subr.bf16.mxu0 0
    %534 = vmatpush1.bf16.msra.mxu0 %v299
    %535 = vmatprep.subr.bf16.mxu0 0
    %536 = vmatpush1.bf16.msra.mxu0 %v298
    %537 = vmatprep.subr.bf16.mxu0 0
    %538 = vmatpush1.bf16.msra.mxu0 %v297
    %539 = vmatprep.subr.bf16.mxu0 0
    %540 = vmatpush1.bf16.msra.mxu0 %v296
    %541 = vmatprep.subr.bf16.mxu0 0
    %542 = vmatpush1.bf16.msra.mxu0 %v295
    %543 = vmatprep.subr.bf16.mxu0 0
    %544 = vmatpush1.bf16.msra.mxu0 %v294
    %545 = vmatprep.subr.bf16.mxu0 0
    %546 = vmatpush1.bf16.msra.mxu0 %v293
    %547 = vmatprep.subr.bf16.mxu0 0
    %548 = vmatpush1.bf16.msra.mxu0 %v292
    %549 = vmatprep.subr.bf16.mxu0 0
    %550 = vmatpush2.bf16.msra.mxu0 0
    %551 = vmatprep.subr.bf16.mxu0 0
    %552 = vmatpush2.bf16.msra.mxu0 0
    %553 = vmatprep.subr.bf16.mxu0 0
    %554 = vmatpush2.bf16.msra.mxu0 0
    %555 = vmatprep.subr.bf16.mxu0 0
    %556 = vmatpush2.bf16.msra.mxu0 0
    %557 = vmatprep.subr.bf16.mxu0 0
    %558 = vmatpush2.bf16.msra.mxu0 0
    %559 = vmatprep.subr.bf16.mxu0 0
    %560 = vmatpush2.bf16.msra.mxu0 0
    %561 = vmatprep.subr.bf16.mxu0 0
    %562 = vmatpush2.bf16.msra.mxu0 0
    %563 = vmatprep.subr.bf16.mxu0 0
    %564 = vmatpush2.bf16.msra.mxu0 0
    %565 = vmatprep.mubr.bf16.mxu0 0
    %566 = vmatmul.mubr.bf16.gmra.mxu0 %v532
    %v567 = vpop.f32.mrf.mxu0
    %v568 = vadd.f32 0.0, %v567
    %v569 = vpop.f32.mrf.mxu0
    %v570 = vpop.f32.mrf.mxu0
    %v571 = vpop.f32.mrf.mxu0
    %572 = vdwg.mxu0
    %v573 = vadd.f32 %v531, %v568
    %v574 = vtanh.pop %v573
    %s575 = scalar_lea.vmem [#allocation3], 48
    %v576 = vld [vmem:[%s575] sm:$0xff]
    %v577 = vpack.c.bf16 %v574, %v574
    %578 = vmatprep.subr.bf16.mxu0 0
    %579 = vmatpush1.bf16.msra.mxu0 %v299
    %580 = vmatprep.subr.bf16.mxu0 0
    %581 = vmatpush1.bf16.msra.mxu0 %v298
    %582 = vmatprep.subr.bf16.mxu0 0
    %583 = vmatpush1.bf16.msra.mxu0 %v297
    %584 = vmatprep.subr.bf16.mxu0 0
    %585 = vmatpush1.bf16.msra.mxu0 %v296
    %586 = vmatprep.subr.bf16.mxu0 0
    %587 = vmatpush1.bf16.msra.mxu0 %v295
    %588 = vmatprep.subr.bf16.mxu0 0
    %589 = vmatpush1.bf16.msra.mxu0 %v294
    %590 = vmatprep.subr.bf16.mxu0 0
    %591 = vmatpush1.bf16.msra.mxu0 %v293
    %592 = vmatprep.subr.bf16.mxu0 0
    %593 = vmatpush1.bf16.msra.mxu0 %v292
    %594 = vmatprep.subr.bf16.mxu0 0
    %595 = vmatpush2.bf16.msra.mxu0 0
    %596 = vmatprep.subr.bf16.mxu0 0
    %597 = vmatpush2.bf16.msra.mxu0 0
    %598 = vmatprep.subr.bf16.mxu0 0
    %599 = vmatpush2.bf16.msra.mxu0 0
    %600 = vmatprep.subr.bf16.mxu0 0
    %601 = vmatpush2.bf16.msra.mxu0 0
    %602 = vmatprep.subr.bf16.mxu0 0
    %603 = vmatpush2.bf16.msra.mxu0 0
    %604 = vmatprep.subr.bf16.mxu0 0
    %605 = vmatpush2.bf16.msra.mxu0 0
    %606 = vmatprep.subr.bf16.mxu0 0
    %607 = vmatpush2.bf16.msra.mxu0 0
    %608 = vmatprep.subr.bf16.mxu0 0
    %609 = vmatpush2.bf16.msra.mxu0 0
    %610 = vmatprep.mubr.bf16.mxu0 0
    %611 = vmatmul.mubr.bf16.gmra.mxu0 %v577
    %v612 = vpop.f32.mrf.mxu0
    %v613 = vadd.f32 0.0, %v612
    %v614 = vpop.f32.mrf.mxu0
    %v615 = vpop.f32.mrf.mxu0
    %v616 = vpop.f32.mrf.mxu0
    %617 = vdwg.mxu0
    %v618 = vadd.f32 %v576, %v613
    %v619 = vtanh.pop %v618
    %s620 = scalar_lea.vmem [#allocation3], 56
    %v621 = vld [vmem:[%s620] sm:$0xff]
    %v622 = vpack.c.bf16 %v619, %v619
    %623 = vmatprep.subr.bf16.mxu0 0
    %624 = vmatpush1.bf16.msra.mxu0 %v299
    %625 = vmatprep.subr.bf16.mxu0 0
    %626 = vmatpush1.bf16.msra.mxu0 %v298
    %627 = vmatprep.subr.bf16.mxu0 0
    %628 = vmatpush1.bf16.msra.mxu0 %v297
    %629 = vmatprep.subr.bf16.mxu0 0
    %630 = vmatpush1.bf16.msra.mxu0 %v296
    %631 = vmatprep.subr.bf16.mxu0 0
    %632 = vmatpush1.bf16.msra.mxu0 %v295
    %633 = vmatprep.subr.bf16.mxu0 0
    %634 = vmatpush1.bf16.msra.mxu0 %v294
    %635 = vmatprep.subr.bf16.mxu0 0
    %636 = vmatpush1.bf16.msra.mxu0 %v293
    %637 = vmatprep.subr.bf16.mxu0 0
    %638 = vmatpush1.bf16.msra.mxu0 %v292
    %639 = vmatprep.subr.bf16.mxu0 0
    %640 = vmatpush2.bf16.msra.mxu0 0
    %641 = vmatprep.subr.bf16.mxu0 0
    %642 = vmatpush2.bf16.msra.mxu0 0
    %643 = vmatprep.subr.bf16.mxu0 0
    %644 = vmatpush2.bf16.msra.mxu0 0
    %645 = vmatprep.subr.bf16.mxu0 0
    %646 = vmatpush2.bf16.msra.mxu0 0
    %647 = vmatprep.subr.bf16.mxu0 0
    %648 = vmatpush2.bf16.msra.mxu0 0
    %649 = vmatprep.subr.bf16.mxu0 0
    %650 = vmatpush2.bf16.msra.mxu0 0
    %651 = vmatprep.subr.bf16.mxu0 0
    %652 = vmatpush2.bf16.msra.mxu0 0
    %653 = vmatprep.subr.bf16.mxu0 0
    %654 = vmatpush2.bf16.msra.mxu0 0
    %655 = vmatprep.mubr.bf16.mxu0 0
    %656 = vmatmul.mubr.bf16.gmra.mxu0 %v622
    %v657 = vpop.f32.mrf.mxu0
    %v658 = vadd.f32 0.0, %v657
    %v659 = vpop.f32.mrf.mxu0
    %v660 = vpop.f32.mrf.mxu0
    %v661 = vpop.f32.mrf.mxu0
    %662 = vdwg.mxu0
    %v663 = vadd.f32 %v621, %v658
    %v664 = vtanh.pop %v663
    %665 = vst [vmem:[#allocation2] sm:$0xff] %v664
    // Predicated region
    $region34: #{tpu_custom_call.1} parent=1 // pred_check
      %p666 = pneg %p60
    $region35: #{tpu_custom_call.1} parent=1 // pred_check_branch
      %668 = sbr.rel (%p666) target = $region37
    $region36: #{tpu_custom_call.1} parent=1 // pred_region
      %669 = vst [vmem:[#allocation10] sm:$0xff] %v664
    $region37: #{tpu_custom_call.1} parent=1 // pred_fallthru
      _
    // Predicated region
    $region38: #{tpu_custom_call.1} parent=1 // pred_check
      _
    $region39: #{tpu_custom_call.1} parent=1 // pred_check_branch
      %671 = sbr.rel (0) target = $region41
    $region40: #{tpu_custom_call.1} parent=1 // pred_region
      %s673 = ssub.s32 128, 128
      %674 = vsyncadd [#allocation6], %s673
      %s676 = sshll.u32 [#allocation10], 4
      %s677 = int_to_ptr.vmem [resolvable:$true] %s676
      %679 = dma.vmem_to_hbm [thread:$0]  %s677, 128, %s4, [#allocation6]
    $region41: #{tpu_custom_call.1} parent=1 // pred_fallthru
      _
    // Predicated region
    $region42: #{tpu_custom_call.1} parent=1 // pred_check
      _
    $region43: #{tpu_custom_call.1} parent=1 // pred_check_branch
      %681 = sbr.rel (0) target = $region45
    $region44: #{tpu_custom_call.1} parent=1 // pred_region
      %682 = dma.done [#allocation6], 128
    $region45: #{tpu_custom_call.1} parent=1 // pred_fallthru
      _
    %683 = vsyncpa [#allocation5], 1
    %684 = vsyncpa [#allocation8], 1
    %685 = vsyncpa [#allocation6], 1

// kernel: tpu_custom_call.1
$region0: #{tpu_custom_call.1}
  #allocation0 [shape = 'u32[]', space=smem, size = 0x4, offset = 0x4, fixed_abs, tag = 'smem constant byte address 0x4 - core index']
  #allocation1 [shape = 'u32[144,128]{1,0:T(1,128)}', space=vmem, size = 0x12000, scoped, tag = 'internal scratch']
  #allocation2 [shape = 'f32[8,128]{1,0:T(8,128)}', space=vmem, size = 0x1000, scoped, tag = 'scratch operand']
  #allocation3 [shape = 'f32[8,8,128]{2,1,0:T(8,128)}', space=vmem, size = 0x8000, scoped, tag = 'scratch operand']
  %s0 = inlined_call_operand.hbm [shape: bf16[8,8,128], index: 0, kind: input, shape index: {}]
  %s1 = inlined_call_operand.hbm [shape: bf16[128,128], index: 1, kind: input, shape index: {}]
  %s2 = inlined_call_operand.hbm [shape: bf16[128,128], index: 2, kind: input, shape index: {}]
  %s3 = inlined_call_operand.vmem [shape: f32[1,128], index: 3, kind: input, shape index: {}]
  %s4 = inlined_call_operand.hbm [shape: f32[8,128], index: 4, kind: output, shape index: {}]
  %s5 = sld [smem:[#allocation0]]
  $region46: #{tpu_custom_call.1} parent=0
    _
  %s7 = ssub.s32 1, %s5
  %s8 = scalar_select 0, %s7, %s5
  $region1: #{tpu_custom_call.1} parent=0
    #allocation4 [shape = 'u8[16384]{0}', space=vmem, size = 0x4000, scoped, tag = 'input window, operand 0, single buffered']
    #allocation5 [shape = 's32[1]{0}', space=sflag, size = 0x4, scoped, tag = 'scoped memory for tpu_custom_call.1']
    #allocation6 [shape = 's32[1]{0}', space=sflag, size = 0x4, scoped, tag = 'scoped memory for tpu_custom_call.1']
    #allocation7 [shape = 'u8[32768]{0}', space=vmem, size = 0x8000, scoped, tag = 'input window, operand 1, single buffered']
    #allocation8 [shape = 's32[1]{0}', space=sflag, size = 0x4, scoped, tag = 'scoped memory for tpu_custom_call.1']
    #allocation9 [shape = 'u8[32768]{0}', space=vmem, size = 0x8000, scoped, tag = 'input window, operand 2, single buffered']
    #allocation10 [shape = 'u8[4096]{0}', space=vmem, size = 0x1000, scoped, tag = 'output window, operand 0, single buffered']
    %9 = vsyncpa [#allocation5], 0
    %10 = vsyncpa [#allocation8], 0
    %11 = vsyncpa [#allocation6], 0
    // Predicated region
    $region2: #{tpu_custom_call.1} parent=1 // pred_check
      _
    $region3: #{tpu_custom_call.1} parent=1 // pred_check_branch
      %13 = sbr.rel (0) target = $region5
    $region4: #{tpu_custom_call.1} parent=1 // pred_region
      %s15 = ssub.s32 512, 512
      %16 = vsyncadd [#allocation5], %s15
      %s17 = sshll.u32 [#allocation4], 4
      %s18 = int_to_ptr.vmem [resolvable:$true] %s17
      %23 = dma.hbm_to_vmem [thread:$0]  %s0, 512, %s18, [#allocation5], 64, 64, 4
    $region5: #{tpu_custom_call.1} parent=1 // pred_fallthru
      _
    // Predicated region
    $region6: #{tpu_custom_call.1} parent=1 // pred_check
      _
    $region7: #{tpu_custom_call.1} parent=1 // pred_check_branch
      %25 = sbr.rel (0) target = $region9
    $region8: #{tpu_custom_call.1} parent=1 // pred_region
      %s27 = ssub.s32 1024, 1024
      %28 = vsyncadd [#allocation8], %s27
      %s29 = sshll.u32 [#allocation7], 4
      %s30 = int_to_ptr.vmem [resolvable:$true] %s29
      %35 = dma.hbm_to_vmem [thread:$0]  %s1, 1024, %s30, [#allocation8], 64, 64, 4
    $region9: #{tpu_custom_call.1} parent=1 // pred_fallthru
      _
    // Predicated region
    $region10: #{tpu_custom_call.1} parent=1 // pred_check
      _
    $region11: #{tpu_custom_call.1} parent=1 // pred_check_branch
      %37 = sbr.rel (0) target = $region13
    $region12: #{tpu_custom_call.1} parent=1 // pred_region
      %s39 = ssub.s32 1024, 1024
      %40 = vsyncadd [#allocation8], %s39
      %s41 = sshll.u32 [#allocation9], 4
      %s42 = int_to_ptr.vmem [resolvable:$true] %s41
      %47 = dma.hbm_to_vmem [thread:$0]  %s2, 1024, %s42, [#allocation8], 64, 64, 4
    $region13: #{tpu_custom_call.1} parent=1 // pred_fallthru
      _
    // Predicated region
    $region14: #{tpu_custom_call.1} parent=1 // pred_check
      _
    $region15: #{tpu_custom_call.1} parent=1 // pred_check_branch
      %49 = sbr.rel (0) target = $region17
    $region16: #{tpu_custom_call.1} parent=1 // pred_region
      _
    $region17: #{tpu_custom_call.1} parent=1 // pred_fallthru
      _
    // Predicated region
    $region18: #{tpu_custom_call.1} parent=1 // pred_check
      _
    $region19: #{tpu_custom_call.1} parent=1 // pred_check_branch
      %51 = sbr.rel (0) target = $region21
    $region20: #{tpu_custom_call.1} parent=1 // pred_region
      %52 = dma.done [#allocation5], 512
    $region21: #{tpu_custom_call.1} parent=1 // pred_fallthru
      _
    // Predicated region
    $region22: #{tpu_custom_call.1} parent=1 // pred_check
      _
    $region23: #{tpu_custom_call.1} parent=1 // pred_check_branch
      %54 = sbr.rel (0) target = $region25
    $region24: #{tpu_custom_call.1} parent=1 // pred_region
      %55 = dma.done [#allocation8], 1024
    $region25: #{tpu_custom_call.1} parent=1 // pred_fallthru
      _
    // Predicated region
    $region26: #{tpu_custom_call.1} parent=1 // pred_check
      _
    $region27: #{tpu_custom_call.1} parent=1 // pred_check_branch
      %57 = sbr.rel (0) target = $region29
    $region28: #{tpu_custom_call.1} parent=1 // pred_region
      %58 = dma.done [#allocation8], 1024
    $region29: #{tpu_custom_call.1} parent=1 // pred_fallthru
      _
    %p60 = scmp.eq.s32.totalorder 0, 0
    // Predicated region
    $region30: #{tpu_custom_call.1} parent=1 // pred_check
      %p61 = pneg %p60
    $region31: #{tpu_custom_call.1} parent=1 // pred_check_branch
      %63 = sbr.rel (%p61) target = $region33
    $region32: #{tpu_custom_call.1} parent=1 // pred_region
      %64 = vst [vmem:[#allocation2] sm:$0xff] 0.0
    $region33: #{tpu_custom_call.1} parent=1 // pred_fallthru
      _
    %v65 = vld [vmem:[#allocation4] sm:$0xf]
    %v66 = vld [vmem:[#allocation4 + $0x4] sm:$0xf]
    %v67 = vld [vmem:[#allocation4 + $0x8] sm:$0xf]
    %v68 = vld [vmem:[#allocation4 + $0xc] sm:$0xf]
    %v69 = vld [vmem:[#allocation4 + $0x10] sm:$0xf]
    %v70 = vld [vmem:[#allocation4 + $0x14] sm:$0xf]
    %v71 = vld [vmem:[#allocation4 + $0x18] sm:$0xf]
    %v72 = vld [vmem:[#allocation4 + $0x1c] sm:$0xf]
    %v73 = vld [vmem:[#allocation7] sm:$0xf]
    %v74 = vld [vmem:[#allocation7 + $0x4] sm:$0xf]
    %v75 = vld [vmem:[#allocation7 + $0x8] sm:$0xf]
    %v76 = vld [vmem:[#allocation7 + $0xc] sm:$0xf]
    %v77 = vld [vmem:[#allocation7 + $0x10] sm:$0xf]
    %v78 = vld [vmem:[#allocation7 + $0x14] sm:$0xf]
    %v79 = vld [vmem:[#allocation7 + $0x18] sm:$0xf]
    %v80 = vld [vmem:[#allocation7 + $0x1c] sm:$0xf]
    %v81 = vld [vmem:[#allocation7 + $0x20] sm:$0xf]
    %v82 = vld [vmem:[#allocation7 + $0x24] sm:$0xf]
    %v83 = vld [vmem:[#allocation7 + $0x28] sm:$0xf]
    %v84 = vld [vmem:[#allocation7 + $0x2c] sm:$0xf]
    %v85 = vld [vmem:[#allocation7 + $0x30] sm:$0xf]
    %v86 = vld [vmem:[#allocation7 + $0x34] sm:$0xf]
    %v87 = vld [vmem:[#allocation7 + $0x38] sm:$0xf]
    %v88 = vld [vmem:[#allocation7 + $0x3c] sm:$0xf]
    %v89 = vld [vmem:[%s3] sm:$0x1]
    %v91 = vlaneseq
    %v92 = vshrl.u32 %v91, 7
    %v93 = vsub.s32 0, %v92
    %v94 = vrot.slane %v89, %v93
    %v104 = vunpack.c.l.b16 %v65
    %v105 = vunpack.c.l.b16 %v66
    %v106 = vunpack.c.l.b16 %v67
    %v107 = vunpack.c.l.b16 %v68
    %v108 = vunpack.c.l.b16 %v69
    %v109 = vunpack.c.l.b16 %v70
    %v110 = vunpack.c.l.b16 %v71
    %v111 = vunpack.c.l.b16 %v72
    %v112 = vpack.c.b16 %v105, %v104
    %v113 = vpack.c.b16 %v107, %v106
    %v114 = vpack.c.b16 %v109, %v108
    %v115 = vpack.c.b16 %v111, %v110
    %v136 = vunpack.c.l.b16 %v73
    %v137 = vunpack.c.l.b16 %v74
    %v138 = vunpack.c.l.b16 %v75
    %v139 = vunpack.c.l.b16 %v76
    %v140 = vunpack.c.l.b16 %v77
    %v141 = vunpack.c.l.b16 %v78
    %v142 = vunpack.c.l.b16 %v79
    %v143 = vunpack.c.l.b16 %v80
    %v144 = vunpack.c.l.b16 %v81
    %v145 = vunpack.c.l.b16 %v82
    %v146 = vunpack.c.l.b16 %v83
    %v147 = vunpack.c.l.b16 %v84
    %v148 = vunpack.c.l.b16 %v85
    %v149 = vunpack.c.l.b16 %v86
    %v150 = vunpack.c.l.b16 %v87
    %v151 = vunpack.c.l.b16 %v88
    %v152 = vpack.c.b16 %v137, %v136
    %v153 = vpack.c.b16 %v139, %v138
    %v154 = vpack.c.b16 %v141, %v140
    %v155 = vpack.c.b16 %v143, %v142
    %v156 = vpack.c.b16 %v145, %v144
    %v157 = vpack.c.b16 %v147, %v146
    %v158 = vpack.c.b16 %v149, %v148
    %v159 = vpack.c.b16 %v151, %v150
    %168 = vmatprep.subr.bf16.mxu0 0
    %169 = vmatpush1.bf16.msra.mxu0 %v159
    %170 = vmatprep.subr.bf16.mxu0 0
    %171 = vmatpush1.bf16.msra.mxu0 %v158
    %172 = vmatprep.subr.bf16.mxu0 0
    %173 = vmatpush1.bf16.msra.mxu0 %v157
    %174 = vmatprep.subr.bf16.mxu0 0
    %175 = vmatpush1.bf16.msra.mxu0 %v156
    %176 = vmatprep.subr.bf16.mxu0 0
    %177 = vmatpush1.bf16.msra.mxu0 %v155
    %178 = vmatprep.subr.bf16.mxu0 0
    %179 = vmatpush1.bf16.msra.mxu0 %v154
    %180 = vmatprep.subr.bf16.mxu0 0
    %181 = vmatpush1.bf16.msra.mxu0 %v153
    %182 = vmatprep.subr.bf16.mxu0 0
    %183 = vmatpush1.bf16.msra.mxu0 %v152
    %184 = vmatprep.subr.bf16.mxu0 0
    %185 = vmatpush2.bf16.msra.mxu0 0
    %186 = vmatprep.subr.bf16.mxu0 0
    %187 = vmatpush2.bf16.msra.mxu0 0
    %188 = vmatprep.subr.bf16.mxu0 0
    %189 = vmatpush2.bf16.msra.mxu0 0
    %190 = vmatprep.subr.bf16.mxu0 0
    %191 = vmatpush2.bf16.msra.mxu0 0
    %192 = vmatprep.subr.bf16.mxu0 0
    %193 = vmatpush2.bf16.msra.mxu0 0
    %194 = vmatprep.subr.bf16.mxu0 0
    %195 = vmatpush2.bf16.msra.mxu0 0
    %196 = vmatprep.subr.bf16.mxu0 0
    %197 = vmatpush2.bf16.msra.mxu0 0
    %198 = vmatprep.subr.bf16.mxu0 0
    %199 = vmatpush2.bf16.msra.mxu0 0
    %200 = vmatprep.mubr.bf16.mxu0 0
    %201 = vmatmul.mubr.bf16.gmra.mxu0 %v112
    %v202 = vpop.f32.mrf.mxu0
    %v203 = vadd.f32 %v94, %v202
    %v204 = vpop.f32.mrf.mxu0
    %v205 = vpop.f32.mrf.mxu0
    %v206 = vadd.f32 %v94, %v205
    %v207 = vpop.f32.mrf.mxu0
    %208 = vmatprep.mubr.bf16.mxu0 0
    %209 = vmatmul.mubr.bf16.gmra.mxu0 %v113
    %v210 = vpop.f32.mrf.mxu0
    %v211 = vadd.f32 %v94, %v210
    %v212 = vpop.f32.mrf.mxu0
    %v213 = vpop.f32.mrf.mxu0
    %v214 = vadd.f32 %v94, %v213
    %v215 = vpop.f32.mrf.mxu0
    %216 = vmatprep.mubr.bf16.mxu0 0
    %217 = vmatmul.mubr.bf16.gmra.mxu0 %v114
    %v218 = vpop.f32.mrf.mxu0
    %v219 = vadd.f32 %v94, %v218
    %v220 = vpop.f32.mrf.mxu0
    %v221 = vpop.f32.mrf.mxu0
    %v222 = vadd.f32 %v94, %v221
    %v223 = vpop.f32.mrf.mxu0
    %224 = vmatprep.mubr.bf16.mxu0 0
    %225 = vmatmul.mubr.bf16.gmra.mxu0 %v115
    %v226 = vpop.f32.mrf.mxu0
    %v227 = vadd.f32 %v94, %v226
    %v228 = vpop.f32.mrf.mxu0
    %v229 = vpop.f32.mrf.mxu0
    %v230 = vadd.f32 %v94, %v229
    %v231 = vpop.f32.mrf.mxu0
    %232 = vdwg.mxu0
    %233 = vst [vmem:[#allocation3] sm:$0xff] %v203
    %234 = vst [vmem:[#allocation3 + $0x8] sm:$0xff] %v206
    %235 = vst [vmem:[#allocation3 + $0x10] sm:$0xff] %v211
    %236 = vst [vmem:[#allocation3 + $0x18] sm:$0xff] %v214
    %237 = vst [vmem:[#allocation3 + $0x20] sm:$0xff] %v219
    %238 = vst [vmem:[#allocation3 + $0x28] sm:$0xff] %v222
    %239 = vst [vmem:[#allocation3 + $0x30] sm:$0xff] %v227
    %240 = vst [vmem:[#allocation3 + $0x38] sm:$0xff] %v230
    %v241 = vld [vmem:[#allocation9] sm:$0xf]
    %v242 = vld [vmem:[#allocation9 + $0x4] sm:$0xf]
    %v243 = vld [vmem:[#allocation9 + $0x8] sm:$0xf]
    %v244 = vld [vmem:[#allocation9 + $0xc] sm:$0xf]
    %v245 = vld [vmem:[#allocation9 + $0x10] sm:$0xf]
    %v246 = vld [vmem:[#allocation9 + $0x14] sm:$0xf]
    %v247 = vld [vmem:[#allocation9 + $0x18] sm:$0xf]
    %v248 = vld [vmem:[#allocation9 + $0x1c] sm:$0xf]
    %v249 = vld [vmem:[#allocation9 + $0x20] sm:$0xf]
    %v250 = vld [vmem:[#allocation9 + $0x24] sm:$0xf]
    %v251 = vld [vmem:[#allocation9 + $0x28] sm:$0xf]
    %v252 = vld [vmem:[#allocation9 + $0x2c] sm:$0xf]
    %v253 = vld [vmem:[#allocation9 + $0x30] sm:$0xf]
    %v254 = vld [vmem:[#allocation9 + $0x34] sm:$0xf]
    %v255 = vld [vmem:[#allocation9 + $0x38] sm:$0xf]
    %v256 = vld [vmem:[#allocation9 + $0x3c] sm:$0xf]
    %v257 = vld [vmem:[#allocation2] sm:$0xff]
    %v258 = vld [vmem:[#allocation3] sm:$0xff]
    %v259 = vpack.c.bf16 %v257, %v257
    %v276 = vunpack.c.l.b16 %v241
    %v277 = vunpack.c.l.b16 %v242
    %v278 = vunpack.c.l.b16 %v243
    %v279 = vunpack.c.l.b16 %v244
    %v280 = vunpack.c.l.b16 %v245
    %v281 = vunpack.c.l.b16 %v246
    %v282 = vunpack.c.l.b16 %v247
    %v283 = vunpack.c.l.b16 %v248
    %v284 = vunpack.c.l.b16 %v249
    %v285 = vunpack.c.l.b16 %v250
    %v286 = vunpack.c.l.b16 %v251
    %v287 = vunpack.c.l.b16 %v252
    %v288 = vunpack.c.l.b16 %v253
    %v289 = vunpack.c.l.b16 %v254
    %v290 = vunpack.c.l.b16 %v255
    %v291 = vunpack.c.l.b16 %v256
    %v292 = vpack.c.b16 %v277, %v276
    %v293 = vpack.c.b16 %v279, %v278
    %v294 = vpack.c.b16 %v281, %v280
    %v295 = vpack.c.b16 %v283, %v282
    %v296 = vpack.c.b16 %v285, %v284
    %v297 = vpack.c.b16 %v287, %v286
    %v298 = vpack.c.b16 %v289, %v288
    %v299 = vpack.c.b16 %v291, %v290
    %308 = vmatprep.subr.bf16.mxu0 0
    %309 = vmatpush1.bf16.msra.mxu0 %v299
    %310 = vmatprep.subr.bf16.mxu0 0
    %311 = vmatpush1.bf16.msra.mxu0 %v298
    %312 = vmatprep.subr.bf16.mxu0 0
    %313 = vmatpush1.bf16.msra.mxu0 %v297
    %314 = vmatprep.subr.bf16.mxu0 0
    %315 = vmatpush1.bf16.msra.mxu0 %v296
    %316 = vmatprep.subr.bf16.mxu0 0
    %317 = vmatpush1.bf16.msra.mxu0 %v295
    %318 = vmatprep.subr.bf16.mxu0 0
    %319 = vmatpush1.bf16.msra.mxu0 %v294
    %320 = vmatprep.subr.bf16.mxu0 0
    %321 = vmatpush1.bf16.msra.mxu0 %v293
    %322 = vmatprep.subr.bf16.mxu0 0
    %323 = vmatpush1.bf16.msra.mxu0 %v292
    %324 = vmatprep.subr.bf16.mxu0 0
    %325 = vmatpush2.bf16.msra.mxu0 0
    %326 = vmatprep.subr.bf16.mxu0 0
    %327 = vmatpush2.bf16.msra.mxu0 0
    %328 = vmatprep.subr.bf16.mxu0 0
    %329 = vmatpush2.bf16.msra.mxu0 0
    %330 = vmatprep.subr.bf16.mxu0 0
    %331 = vmatpush2.bf16.msra.mxu0 0
    %332 = vmatprep.subr.bf16.mxu0 0
    %333 = vmatpush2.bf16.msra.mxu0 0
    %334 = vmatprep.subr.bf16.mxu0 0
    %335 = vmatpush2.bf16.msra.mxu0 0
    %336 = vmatprep.subr.bf16.mxu0 0
    %337 = vmatpush2.bf16.msra.mxu0 0
    %338 = vmatprep.subr.bf16.mxu0 0
    %339 = vmatpush2.bf16.msra.mxu0 0
    %340 = vmatprep.mubr.bf16.mxu0 0
    %341 = vmatmul.mubr.bf16.gmra.mxu0 %v259
    %v342 = vpop.f32.mrf.mxu0
    %v343 = vadd.f32 0.0, %v342
    %v344 = vpop.f32.mrf.mxu0
    %v345 = vpop.f32.mrf.mxu0
    %v346 = vpop.f32.mrf.mxu0
    %347 = vdwg.mxu0
    %v348 = vadd.f32 %v258, %v343
    %v349 = vtanh.pop %v348
    %s350 = scalar_lea.vmem [#allocation3], 8
    %v351 = vld [vmem:[%s350] sm:$0xff]
    %v352 = vpack.c.bf16 %v349, %v349
    %353 = vmatprep.subr.bf16.mxu0 0
    %354 = vmatpush1.bf16.msra.mxu0 %v299
    %355 = vmatprep.subr.bf16.mxu0 0
    %356 = vmatpush1.bf16.msra.mxu0 %v298
    %357 = vmatprep.subr.bf16.mxu0 0
    %358 = vmatpush1.bf16.msra.mxu0 %v297
    %359 = vmatprep.subr.bf16.mxu0 0
    %360 = vmatpush1.bf16.msra.mxu0 %v296
    %361 = vmatprep.subr.bf16.mxu0 0
    %362 = vmatpush1.bf16.msra.mxu0 %v295
    %363 = vmatprep.subr.bf16.mxu0 0
    %364 = vmatpush1.bf16.msra.mxu0 %v294
    %365 = vmatprep.subr.bf16.mxu0 0
    %366 = vmatpush1.bf16.msra.mxu0 %v293
    %367 = vmatprep.subr.bf16.mxu0 0
    %368 = vmatpush1.bf16.msra.mxu0 %v292
    %369 = vmatprep.subr.bf16.mxu0 0
    %370 = vmatpush2.bf16.msra.mxu0 0
    %371 = vmatprep.subr.bf16.mxu0 0
    %372 = vmatpush2.bf16.msra.mxu0 0
    %373 = vmatprep.subr.bf16.mxu0 0
    %374 = vmatpush2.bf16.msra.mxu0 0
    %375 = vmatprep.subr.bf16.mxu0 0
    %376 = vmatpush2.bf16.msra.mxu0 0
    %377 = vmatprep.subr.bf16.mxu0 0
    %378 = vmatpush2.bf16.msra.mxu0 0
    %379 = vmatprep.subr.bf16.mxu0 0
    %380 = vmatpush2.bf16.msra.mxu0 0
    %381 = vmatprep.subr.bf16.mxu0 0
    %382 = vmatpush2.bf16.msra.mxu0 0
    %383 = vmatprep.subr.bf16.mxu0 0
    %384 = vmatpush2.bf16.msra.mxu0 0
    %385 = vmatprep.mubr.bf16.mxu0 0
    %386 = vmatmul.mubr.bf16.gmra.mxu0 %v352
    %v387 = vpop.f32.mrf.mxu0
    %v388 = vadd.f32 0.0, %v387
    %v389 = vpop.f32.mrf.mxu0
    %v390 = vpop.f32.mrf.mxu0
    %v391 = vpop.f32.mrf.mxu0
    %392 = vdwg.mxu0
    %v393 = vadd.f32 %v351, %v388
    %v394 = vtanh.pop %v393
    %s395 = scalar_lea.vmem [#allocation3], 16
    %v396 = vld [vmem:[%s395] sm:$0xff]
    %v397 = vpack.c.bf16 %v394, %v394
    %398 = vmatprep.subr.bf16.mxu0 0
    %399 = vmatpush1.bf16.msra.mxu0 %v299
    %400 = vmatprep.subr.bf16.mxu0 0
    %401 = vmatpush1.bf16.msra.mxu0 %v298
    %402 = vmatprep.subr.bf16.mxu0 0
    %403 = vmatpush1.bf16.msra.mxu0 %v297
    %404 = vmatprep.subr.bf16.mxu0 0
    %405 = vmatpush1.bf16.msra.mxu0 %v296
    %406 = vmatprep.subr.bf16.mxu0 0
    %407 = vmatpush1.bf16.msra.mxu0 %v295
    %408 = vmatprep.subr.bf16.mxu0 0
    %409 = vmatpush1.bf16.msra.mxu0 %v294
    %410 = vmatprep.subr.bf16.mxu0 0
    %411 = vmatpush1.bf16.msra.mxu0 %v293
    %412 = vmatprep.subr.bf16.mxu0 0
    %413 = vmatpush1.bf16.msra.mxu0 %v292
    %414 = vmatprep.subr.bf16.mxu0 0
    %415 = vmatpush2.bf16.msra.mxu0 0
    %416 = vmatprep.subr.bf16.mxu0 0
    %417 = vmatpush2.bf16.msra.mxu0 0
    %418 = vmatprep.subr.bf16.mxu0 0
    %419 = vmatpush2.bf16.msra.mxu0 0
    %420 = vmatprep.subr.bf16.mxu0 0
    %421 = vmatpush2.bf16.msra.mxu0 0
    %422 = vmatprep.subr.bf16.mxu0 0
    %423 = vmatpush2.bf16.msra.mxu0 0
    %424 = vmatprep.subr.bf16.mxu0 0
    %425 = vmatpush2.bf16.msra.mxu0 0
    %426 = vmatprep.subr.bf16.mxu0 0
    %427 = vmatpush2.bf16.msra.mxu0 0
    %428 = vmatprep.subr.bf16.mxu0 0
    %429 = vmatpush2.bf16.msra.mxu0 0
    %430 = vmatprep.mubr.bf16.mxu0 0
    %431 = vmatmul.mubr.bf16.gmra.mxu0 %v397
    %v432 = vpop.f32.mrf.mxu0
    %v433 = vadd.f32 0.0, %v432
    %v434 = vpop.f32.mrf.mxu0
    %v435 = vpop.f32.mrf.mxu0
    %v436 = vpop.f32.mrf.mxu0
    %437 = vdwg.mxu0
    %v438 = vadd.f32 %v396, %v433
    %v439 = vtanh.pop %v438
    %s440 = scalar_lea.vmem [#allocation3], 24
    %v441 = vld [vmem:[%s440] sm:$0xff]
    %v442 = vpack.c.bf16 %v439, %v439
    %443 = vmatprep.subr.bf16.mxu0 0
    %444 = vmatpush1.bf16.msra.mxu0 %v299
    %445 = vmatprep.subr.bf16.mxu0 0
    %446 = vmatpush1.bf16.msra.mxu0 %v298
    %447 = vmatprep.subr.bf16.mxu0 0
    %448 = vmatpush1.bf16.msra.mxu0 %v297
    %449 = vmatprep.subr.bf16.mxu0 0
    %450 = vmatpush1.bf16.msra.mxu0 %v296
    %451 = vmatprep.subr.bf16.mxu0 0
    %452 = vmatpush1.bf16.msra.mxu0 %v295
    %453 = vmatprep.subr.bf16.mxu0 0
    %454 = vmatpush1.bf16.msra.mxu0 %v294
    %455 = vmatprep.subr.bf16.mxu0 0
    %456 = vmatpush1.bf16.msra.mxu0 %v293
    %457 = vmatprep.subr.bf16.mxu0 0
    %458 = vmatpush1.bf16.msra.mxu0 %v292
    %459 = vmatprep.subr.bf16.mxu0 0
    %460 = vmatpush2.bf16.msra.mxu0 0
    %461 = vmatprep.subr.bf16.mxu0 0
    %462 = vmatpush2.bf16.msra.mxu0 0
    %463 = vmatprep.subr.bf16.mxu0 0
    %464 = vmatpush2.bf16.msra.mxu0 0
    %465 = vmatprep.subr.bf16.mxu0 0
    %466 = vmatpush2.bf16.msra.mxu0 0
    %467 = vmatprep.subr.bf16.mxu0 0
    %468 = vmatpush2.bf16.msra.mxu0 0
    %469 = vmatprep.subr.bf16.mxu0 0
    %470 = vmatpush2.bf16.msra.mxu0 0
    %471 = vmatprep.subr.bf16.mxu0 0
    %472 = vmatpush2.bf16.msra.mxu0 0
    %473 = vmatprep.subr.bf16.mxu0 0
    %474 = vmatpush2.bf16.msra.mxu0 0
    %475 = vmatprep.mubr.bf16.mxu0 0
    %476 = vmatmul.mubr.bf16.gmra.mxu0 %v442
    %v477 = vpop.f32.mrf.mxu0
    %v478 = vadd.f32 0.0, %v477
    %v479 = vpop.f32.mrf.mxu0
    %v480 = vpop.f32.mrf.mxu0
    %v481 = vpop.f32.mrf.mxu0
    %482 = vdwg.mxu0
    %v483 = vadd.f32 %v441, %v478
    %v484 = vtanh.pop %v483
    %s485 = scalar_lea.vmem [#allocation3], 32
    %v486 = vld [vmem:[%s485] sm:$0xff]
    %v487 = vpack.c.bf16 %v484, %v484
    %488 = vmatprep.subr.bf16.mxu0 0
    %489 = vmatpush1.bf16.msra.mxu0 %v299
    %490 = vmatprep.subr.bf16.mxu0 0
    %491 = vmatpush1.bf16.msra.mxu0 %v298
    %492 = vmatprep.subr.bf16.mxu0 0
    %493 = vmatpush1.bf16.msra.mxu0 %v297
    %494 = vmatprep.subr.bf16.mxu0 0
    %495 = vmatpush1.bf16.msra.mxu0 %v296
    %496 = vmatprep.subr.bf16.mxu0 0
    %497 = vmatpush1.bf16.msra.mxu0 %v295
    %498 = vmatprep.subr.bf16.mxu0 0
    %499 = vmatpush1.bf16.msra.mxu0 %v294
    %500 = vmatprep.subr.bf16.mxu0 0
    %501 = vmatpush1.bf16.msra.mxu0 %v293
    %502 = vmatprep.subr.bf16.mxu0 0
    %503 = vmatpush1.bf16.msra.mxu0 %v292
    %504 = vmatprep.subr.bf16.mxu0 0
    %505 = vmatpush2.bf16.msra.mxu0 0
    %506 = vmatprep.subr.bf16.mxu0 0
    %507 = vmatpush2.bf16.msra.mxu0 0
    %508 = vmatprep.subr.bf16.mxu0 0
    %509 = vmatpush2.bf16.msra.mxu0 0
    %510 = vmatprep.subr.bf16.mxu0 0
    %511 = vmatpush2.bf16.msra.mxu0 0
    %512 = vmatprep.subr.bf16.mxu0 0
    %513 = vmatpush2.bf16.msra.mxu0 0
    %514 = vmatprep.subr.bf16.mxu0 0
    %515 = vmatpush2.bf16.msra.mxu0 0
    %516 = vmatprep.subr.bf16.mxu0 0
    %517 = vmatpush2.bf16.msra.mxu0 0
    %518 = vmatprep.subr.bf16.mxu0 0
    %519 = vmatpush2.bf16.msra.mxu0 0
    %520 = vmatprep.mubr.bf16.mxu0 0
    %521 = vmatmul.mubr.bf16.gmra.mxu0 %v487
    %v522 = vpop.f32.mrf.mxu0
    %v523 = vadd.f32 0.0, %v522
    %v524 = vpop.f32.mrf.mxu0
    %v525 = vpop.f32.mrf.mxu0
    %v526 = vpop.f32.mrf.mxu0
    %527 = vdwg.mxu0
    %v528 = vadd.f32 %v486, %v523
    %v529 = vtanh.pop %v528
    %s530 = scalar_lea.vmem [#allocation3], 40
    %v531 = vld [vmem:[%s530] sm:$0xff]
    %v532 = vpack.c.bf16 %v529, %v529
    %533 = vmatprep.subr.bf16.mxu0 0
    %534 = vmatpush1.bf16.msra.mxu0 %v299
    %535 = vmatprep.subr.bf16.mxu0 0
    %536 = vmatpush1.bf16.msra.mxu0 %v298
    %537 = vmatprep.subr.bf16.mxu0 0
    %538 = vmatpush1.bf16.msra.mxu0 %v297
    %539 = vmatprep.subr.bf16.mxu0 0
    %540 = vmatpush1.bf16.msra.mxu0 %v296
    %541 = vmatprep.subr.bf16.mxu0 0
    %542 = vmatpush1.bf16.msra.mxu0 %v295
    %543 = vmatprep.subr.bf16.mxu0 0
    %544 = vmatpush1.bf16.msra.mxu0 %v294
    %545 = vmatprep.subr.bf16.mxu0 0
    %546 = vmatpush1.bf16.msra.mxu0 %v293
    %547 = vmatprep.subr.bf16.mxu0 0
    %548 = vmatpush1.bf16.msra.mxu0 %v292
    %549 = vmatprep.subr.bf16.mxu0 0
    %550 = vmatpush2.bf16.msra.mxu0 0
    %551 = vmatprep.subr.bf16.mxu0 0
    %552 = vmatpush2.bf16.msra.mxu0 0
    %553 = vmatprep.subr.bf16.mxu0 0
    %554 = vmatpush2.bf16.msra.mxu0 0
    %555 = vmatprep.subr.bf16.mxu0 0
    %556 = vmatpush2.bf16.msra.mxu0 0
    %557 = vmatprep.subr.bf16.mxu0 0
    %558 = vmatpush2.bf16.msra.mxu0 0
    %559 = vmatprep.subr.bf16.mxu0 0
    %560 = vmatpush2.bf16.msra.mxu0 0
    %561 = vmatprep.subr.bf16.mxu0 0
    %562 = vmatpush2.bf16.msra.mxu0 0
    %563 = vmatprep.subr.bf16.mxu0 0
    %564 = vmatpush2.bf16.msra.mxu0 0
    %565 = vmatprep.mubr.bf16.mxu0 0
    %566 = vmatmul.mubr.bf16.gmra.mxu0 %v532
    %v567 = vpop.f32.mrf.mxu0
    %v568 = vadd.f32 0.0, %v567
    %v569 = vpop.f32.mrf.mxu0
    %v570 = vpop.f32.mrf.mxu0
    %v571 = vpop.f32.mrf.mxu0
    %572 = vdwg.mxu0
    %v573 = vadd.f32 %v531, %v568
    %v574 = vtanh.pop %v573
    %s575 = scalar_lea.vmem [#allocation3], 48
    %v576 = vld [vmem:[%s575] sm:$0xff]
    %v577 = vpack.c.bf16 %v574, %v574
    %578 = vmatprep.subr.bf16.mxu0 0
    %579 = vmatpush1.bf16.msra.mxu0 %v299
    %580 = vmatprep.subr.bf16.mxu0 0
    %581 = vmatpush1.bf16.msra.mxu0 %v298
    %582 = vmatprep.subr.bf16.mxu0 0
    %583 = vmatpush1.bf16.msra.mxu0 %v297
    %584 = vmatprep.subr.bf16.mxu0 0
    %585 = vmatpush1.bf16.msra.mxu0 %v296
    %586 = vmatprep.subr.bf16.mxu0 0
    %587 = vmatpush1.bf16.msra.mxu0 %v295
    %588 = vmatprep.subr.bf16.mxu0 0
    %589 = vmatpush1.bf16.msra.mxu0 %v294
    %590 = vmatprep.subr.bf16.mxu0 0
    %591 = vmatpush1.bf16.msra.mxu0 %v293
    %592 = vmatprep.subr.bf16.mxu0 0
    %593 = vmatpush1.bf16.msra.mxu0 %v292
    %594 = vmatprep.subr.bf16.mxu0 0
    %595 = vmatpush2.bf16.msra.mxu0 0
    %596 = vmatprep.subr.bf16.mxu0 0
    %597 = vmatpush2.bf16.msra.mxu0 0
    %598 = vmatprep.subr.bf16.mxu0 0
    %599 = vmatpush2.bf16.msra.mxu0 0
    %600 = vmatprep.subr.bf16.mxu0 0
    %601 = vmatpush2.bf16.msra.mxu0 0
    %602 = vmatprep.subr.bf16.mxu0 0
    %603 = vmatpush2.bf16.msra.mxu0 0
    %604 = vmatprep.subr.bf16.mxu0 0
    %605 = vmatpush2.bf16.msra.mxu0 0
    %606 = vmatprep.subr.bf16.mxu0 0
    %607 = vmatpush2.bf16.msra.mxu0 0
    %608 = vmatprep.subr.bf16.mxu0 0
    %609 = vmatpush2.bf16.msra.mxu0 0
    %610 = vmatprep.mubr.bf16.mxu0 0
    %611 = vmatmul.mubr.bf16.gmra.mxu0 %v577
    %v612 = vpop.f32.mrf.mxu0
    %v613 = vadd.f32 0.0, %v612
    %v614 = vpop.f32.mrf.mxu0
    %v615 = vpop.f32.mrf.mxu0
    %v616 = vpop.f32.mrf.mxu0
    %617 = vdwg.mxu0
    %v618 = vadd.f32 %v576, %v613
    %v619 = vtanh.pop %v618
    %s620 = scalar_lea.vmem [#allocation3], 56
    %v621 = vld [vmem:[%s620] sm:$0xff]
    %v622 = vpack.c.bf16 %v619, %v619
    %623 = vmatprep.subr.bf16.mxu0 0
    %624 = vmatpush1.bf16.msra.mxu0 %v299
    %625 = vmatprep.subr.bf16.mxu0 0
    %626 = vmatpush1.bf16.msra.mxu0 %v298
    %627 = vmatprep.subr.bf16.mxu0 0
    %628 = vmatpush1.bf16.msra.mxu0 %v297
    %629 = vmatprep.subr.bf16.mxu0 0
    %630 = vmatpush1.bf16.msra.mxu0 %v296
    %631 = vmatprep.subr.bf16.mxu0 0
    %632 = vmatpush1.bf16.msra.mxu0 %v295
    %633 = vmatprep.subr.bf16.mxu0 0
    %634 = vmatpush1.bf16.msra.mxu0 %v294
    %635 = vmatprep.subr.bf16.mxu0 0
    %636 = vmatpush1.bf16.msra.mxu0 %v293
    %637 = vmatprep.subr.bf16.mxu0 0
    %638 = vmatpush1.bf16.msra.mxu0 %v292
    %639 = vmatprep.subr.bf16.mxu0 0
    %640 = vmatpush2.bf16.msra.mxu0 0
    %641 = vmatprep.subr.bf16.mxu0 0
    %642 = vmatpush2.bf16.msra.mxu0 0
    %643 = vmatprep.subr.bf16.mxu0 0
    %644 = vmatpush2.bf16.msra.mxu0 0
    %645 = vmatprep.subr.bf16.mxu0 0
    %646 = vmatpush2.bf16.msra.mxu0 0
    %647 = vmatprep.subr.bf16.mxu0 0
    %648 = vmatpush2.bf16.msra.mxu0 0
    %649 = vmatprep.subr.bf16.mxu0 0
    %650 = vmatpush2.bf16.msra.mxu0 0
    %651 = vmatprep.subr.bf16.mxu0 0
    %652 = vmatpush2.bf16.msra.mxu0 0
    %653 = vmatprep.subr.bf16.mxu0 0
    %654 = vmatpush2.bf16.msra.mxu0 0
    %655 = vmatprep.mubr.bf16.mxu0 0
    %656 = vmatmul.mubr.bf16.gmra.mxu0 %v622
    %v657 = vpop.f32.mrf.mxu0
    %v658 = vadd.f32 0.0, %v657
    %v659 = vpop.f32.mrf.mxu0
    %v660 = vpop.f32.mrf.mxu0
    %v661 = vpop.f32.mrf.mxu0
    %662 = vdwg.mxu0
    %v663 = vadd.f32 %v621, %v658
    %v664 = vtanh.pop %v663
    %665 = vst [vmem:[#allocation2] sm:$0xff] %v664
    // Predicated region
    $region34: #{tpu_custom_call.1} parent=1 // pred_check
      %p666 = pneg %p60
    $region35: #{tpu_custom_call.1} parent=1 // pred_check_branch
      %668 = sbr.rel (%p666) target = $region37
    $region36: #{tpu_custom_call.1} parent=1 // pred_region
      %669 = vst [vmem:[#allocation10] sm:$0xff] %v664
    $region37: #{tpu_custom_call.1} parent=1 // pred_fallthru
      _
    // Predicated region
    $region38: #{tpu_custom_call.1} parent=1 // pred_check
      _
    $region39: #{tpu_custom_call.1} parent=1 // pred_check_branch
      %671 = sbr.rel (0) target = $region41
    $region40: #{tpu_custom_call.1} parent=1 // pred_region
      %s673 = ssub.s32 128, 128
      %674 = vsyncadd [#allocation6], %s673
      %s676 = sshll.u32 [#allocation10], 4
      %s677 = int_to_ptr.vmem [resolvable:$true] %s676
      %679 = dma.vmem_to_hbm [thread:$0]  %s677, 128, %s4, [#allocation6]
    $region41: #{tpu_custom_call.1} parent=1 // pred_fallthru
      _
    // Predicated region
    $region42: #{tpu_custom_call.1} parent=1 // pred_check
      _
    $region43: #{tpu_custom_call.1} parent=1 // pred_check_branch
      %681 = sbr.rel (0) target = $region45
    $region44: #{tpu_custom_call.1} parent=1 // pred_region
      %682 = dma.done [#allocation6], 128
    $region45: #{tpu_custom_call.1} parent=1 // pred_fallthru
      _
    %683 = vsyncpa [#allocation5], 1
    %684 = vsyncpa [#allocation8], 1
    %685 = vsyncpa [#allocation6], 1

</llo_original>
